<compile_context>
chip_gen: v5e
topology: v5e:2x2
jax: 0.10.0
libtpu: 0.0.40
codegen_flags: <defaults>
</compile_context>

<pallas_src>
import functools

import jax
import jax.numpy as jnp
from jax.experimental import pallas as pl
from jax.experimental.pallas import tpu as pltpu

# Logical (torch) dimensions.
D_IN, D1, D2, D3, D_OUT = 100, 128, 256, 512, 784
# Lane-aligned dimensions used inside the kernel.
D_IN_PAD = 128     # 100 -> 128  (zero-pad the K dim of the first matmul)
D_OUT_PAD = 896    # 784 -> 896 = 7*128 (lane-dense output slab)

LN_EPS = 1e-5          # torch.nn.LayerNorm default
LEAKY_SLOPE = 0.02


def _leaky_relu(x):
    return jnp.where(x >= 0, x, LEAKY_SLOPE * x)


def _layer_norm(x, gamma, beta):
    # Normalize over last dim, biased variance (torch LayerNorm semantics).
    mean = jnp.mean(x, axis=-1, keepdims=True)
    centered = x - mean
    var = jnp.mean(centered * centered, axis=-1, keepdims=True)
    inv = jax.lax.rsqrt(var + LN_EPS)
    return centered * inv * gamma + beta


def generator_kernel(
    x_ref,
    w1_ref, b1_ref, g1_ref, be1_ref,
    w2_ref, b2_ref, g2_ref, be2_ref,
    w3_ref, b3_ref, g3_ref, be3_ref,
    w4_ref, b4_ref,
    o_ref,
):
    # Block 1: bf16 x bf16 matmul, f32 accumulation; elementwise math in f32.
    h = jnp.dot(x_ref[...], w1_ref[...], preferred_element_type=jnp.float32)
    h = h + b1_ref[...]
    h = _layer_norm(_leaky_relu(h), g1_ref[...], be1_ref[...])

    # Block 2
    h = jnp.dot(h.astype(jnp.bfloat16), w2_ref[...],
                preferred_element_type=jnp.float32)
    h = h + b2_ref[...]
    h = _layer_norm(_leaky_relu(h), g2_ref[...], be2_ref[...])

    # Block 3
    h = jnp.dot(h.astype(jnp.bfloat16), w3_ref[...],
                preferred_element_type=jnp.float32)
    h = h + b3_ref[...]
    h = _layer_norm(_leaky_relu(h), g3_ref[...], be3_ref[...])

    # Output block
    h = jnp.dot(h.astype(jnp.bfloat16), w4_ref[...],
                preferred_element_type=jnp.float32)
    h = h + b4_ref[...]
    o_ref[...] = jnp.tanh(h).astype(o_ref.dtype)


def _const_spec(shape):
    # Whole array as a single block, same block index for every grid step.
    ndim = len(shape)
    return pl.BlockSpec(shape, lambda i: (0,) * ndim)


def _round_up(n, m):
    return ((n + m - 1) // m) * m


@functools.partial(jax.jit, static_argnames=("block_b",))
def generator_forward(x, kernel_params, *, block_b=256):
    """x: (B, 100) f32.  kernel_params: output of prepare_params()."""
    B = x.shape[0]

    # Pick the batch tile: as large as possible up to block_b, multiple of 8,
    # and (when the batch is big enough) at least 2 grid steps so both v7x
    # TensorCores get work under dimension_semantics=("parallel",).
    B8 = _round_up(B, 8)
    bb = min(block_b, B8)
    if bb == B8 and B8 >= 16:
        bb = _round_up(B8 // 2, 8)
    B_pad = _round_up(B, bb)

    # Pad batch + feature dims and cast the activation input to bf16.
    xp = jnp.pad(x.astype(jnp.bfloat16),
                 ((0, B_pad - B), (0, D_IN_PAD - D_IN)))

    in_specs = [pl.BlockSpec((bb, D_IN_PAD), lambda i: (i, 0))]
    for p in kernel_params:
        in_specs.append(_const_spec(p.shape))
    out_spec = pl.BlockSpec((bb, D_OUT_PAD), lambda i: (i, 0))

    out = pl.pallas_call(
        generator_kernel,
        out_shape=jax.ShapeDtypeStruct((B_pad, D_OUT_PAD), jnp.float32),
        grid_spec=pltpu.PrefetchScalarGridSpec(
            num_scalar_prefetch=0,
            grid=(B_pad // bb,),
            in_specs=in_specs,
            out_specs=out_spec,
        ),
        compiler_params=pltpu.CompilerParams(
            dimension_semantics=("parallel",),
            vmem_limit_bytes=64 * 1024 * 1024,
        ),
    )(xp, *kernel_params)

    # Strip batch / feature padding.
    return out[:B, :D_OUT].astype(x.dtype)


def init_params(key):
    """Deterministic synthetic f32 parameters (shapes match the torch module)."""
    def linear(key, d_in, d_out):
        kw, kb = jax.random.split(key)
        bound = 1.0 / (d_in ** 0.5)
        w = jax.random.uniform(kw, (d_in, d_out), jnp.float32, -bound, bound)
        b = jax.random.uniform(kb, (d_out,), jnp.float32, -bound, bound)
        return w, b.reshape(1, d_out)

    keys = jax.random.split(key, 4)
    w1, b1 = linear(keys[0], D_IN, D1)
    w2, b2 = linear(keys[1], D1, D2)
    w3, b3 = linear(keys[2], D2, D3)
    w4, b4 = linear(keys[3], D3, D_OUT)

    # LayerNorm affine params (torch default init: weight=1, bias=0).
    g1, be1 = jnp.ones((1, D1), jnp.float32), jnp.zeros((1, D1), jnp.float32)
    g2, be2 = jnp.ones((1, D2), jnp.float32), jnp.zeros((1, D2), jnp.float32)
    g3, be3 = jnp.ones((1, D3), jnp.float32), jnp.zeros((1, D3), jnp.float32)

    return (w1, b1, g1, be1,
            w2, b2, g2, be2,
            w3, b3, g3, be3,
            w4, b4)


def prepare_params(params):
    """Host-side prep: pad to lane-aligned shapes, cast matmul weights to bf16.

    Biases and LayerNorm affine params stay f32 (they feed f32 elementwise ops).
    """
    (w1, b1, g1, be1,
     w2, b2, g2, be2,
     w3, b3, g3, be3,
     w4, b4) = params

    w1p = jnp.pad(w1, ((0, D_IN_PAD - D_IN), (0, 0))).astype(jnp.bfloat16)
    w2p = w2.astype(jnp.bfloat16)
    w3p = w3.astype(jnp.bfloat16)
    w4p = jnp.pad(w4, ((0, 0), (0, D_OUT_PAD - D_OUT))).astype(jnp.bfloat16)
    b4p = jnp.pad(b4, ((0, 0), (0, D_OUT_PAD - D_OUT)))

    return (w1p, b1, g1, be1,
            w2p, b2, g2, be2,
            w3p, b3, g3, be3,
            w4p, b4p)


def reference_forward(x, params):
    """Pure-JAX f32 reference matching the torch forward."""
    (w1, b1, g1, be1,
     w2, b2, g2, be2,
     w3, b3, g3, be3,
     w4, b4) = params
    h = _layer_norm(_leaky_relu(x @ w1 + b1), g1, be1)
    h = _layer_norm(_leaky_relu(h @ w2 + b2), g2, be2)
    h = _layer_norm(_leaky_relu(h @ w3 + b3), g3, be3)
    return jnp.tanh(h @ w4 + b4)


if __name__ == "__main__":
    key = jax.random.PRNGKey(0)
    k_params, k_x = jax.random.split(key)

    params = init_params(k_params)               # f32 "torch" parameters
    kernel_params = prepare_params(params)       # padded / bf16 kernel parameters

    batch = 8
    x = jax.random.normal(k_x, (batch, D_IN), jnp.float32)

    out = generator_forward(x, kernel_params, block_b=256)
    out = jax.block_until_ready(out)

    ref = reference_forward(x, params)
    assert out.shape == (batch, D_OUT)
    # bf16 matmul operands (f32 accumulation) vs. f32 reference -> loose tol.
    max_err = float(jnp.max(jnp.abs(out - ref)))
    assert max_err < 5e-2, f"mismatch vs reference: max abs err {max_err}"

    print("KERNEL_OK")
</pallas_src>

<mosaic_0001>
module attributes {stable_mosaic.version = 11 : i64} {
  func.func @generator_kernel(%arg0: i32, %arg1: memref<8x128xbf16, #tpu.memory_space<vmem>>, %arg2: memref<128x128xbf16, #tpu.memory_space<vmem>>, %arg3: memref<1x128xf32, #tpu.memory_space<vmem>>, %arg4: memref<1x128xf32, #tpu.memory_space<vmem>>, %arg5: memref<1x128xf32, #tpu.memory_space<vmem>>, %arg6: memref<128x256xbf16, #tpu.memory_space<vmem>>, %arg7: memref<1x256xf32, #tpu.memory_space<vmem>>, %arg8: memref<1x256xf32, #tpu.memory_space<vmem>>, %arg9: memref<1x256xf32, #tpu.memory_space<vmem>>, %arg10: memref<256x512xbf16, #tpu.memory_space<vmem>>, %arg11: memref<1x512xf32, #tpu.memory_space<vmem>>, %arg12: memref<1x512xf32, #tpu.memory_space<vmem>>, %arg13: memref<1x512xf32, #tpu.memory_space<vmem>>, %arg14: memref<512x896xbf16, #tpu.memory_space<vmem>>, %arg15: memref<1x896xf32, #tpu.memory_space<vmem>>, %arg16: memref<8x896xf32, #tpu.memory_space<vmem>>) attributes {dimension_semantics = [#tpu.dimension_semantics<parallel>], iteration_bounds = array<i64: 1>, scalar_prefetch = 0 : i64, scratch_operands = 0 : i64, tpu.core_type = #tpu.core_type<tc>, window_params = [{transform_indices = @transform_0, window_bounds = array<i64: 8, 128>}, {pipeline_mode = #tpu.pipeline_mode<synchronous>, transform_indices = @transform_1, window_bounds = array<i64: 128, 128>}, {pipeline_mode = #tpu.pipeline_mode<synchronous>, transform_indices = @transform_2, window_bounds = array<i64: 1, 128>}, {pipeline_mode = #tpu.pipeline_mode<synchronous>, transform_indices = @transform_3, window_bounds = array<i64: 1, 128>}, {pipeline_mode = #tpu.pipeline_mode<synchronous>, transform_indices = @transform_4, window_bounds = array<i64: 1, 128>}, {pipeline_mode = #tpu.pipeline_mode<synchronous>, transform_indices = @transform_5, window_bounds = array<i64: 128, 256>}, {pipeline_mode = #tpu.pipeline_mode<synchronous>, transform_indices = @transform_6, window_bounds = array<i64: 1, 256>}, {pipeline_mode = #tpu.pipeline_mode<synchronous>, transform_indices = @transform_7, window_bounds = array<i64: 1, 256>}, {pipeline_mode = #tpu.pipeline_mode<synchronous>, transform_indices = @transform_8, window_bounds = array<i64: 1, 256>}, {pipeline_mode = #tpu.pipeline_mode<synchronous>, transform_indices = @transform_9, window_bounds = array<i64: 256, 512>}, {pipeline_mode = #tpu.pipeline_mode<synchronous>, transform_indices = @transform_10, window_bounds = array<i64: 1, 512>}, {pipeline_mode = #tpu.pipeline_mode<synchronous>, transform_indices = @transform_11, window_bounds = array<i64: 1, 512>}, {pipeline_mode = #tpu.pipeline_mode<synchronous>, transform_indices = @transform_12, window_bounds = array<i64: 1, 512>}, {pipeline_mode = #tpu.pipeline_mode<synchronous>, transform_indices = @transform_13, window_bounds = array<i64: 512, 896>}, {pipeline_mode = #tpu.pipeline_mode<synchronous>, transform_indices = @transform_14, window_bounds = array<i64: 1, 896>}, {transform_indices = @transform_15, window_bounds = array<i64: 8, 896>}]} {
    %c0 = arith.constant 0 : index
    %c0_0 = arith.constant 0 : index
    %0 = vector.load %arg1[%c0, %c0_0] : memref<8x128xbf16, #tpu.memory_space<vmem>>, vector<8x128xbf16>
    %c0_1 = arith.constant 0 : index
    %c0_2 = arith.constant 0 : index
    %1 = vector.load %arg2[%c0_1, %c0_2] : memref<128x128xbf16, #tpu.memory_space<vmem>>, vector<128x128xbf16>
    %cst = arith.constant dense<0.000000e+00> : vector<8x128xf32>
    %2 = tpu.matmul %0, %1, %cst {dimension_numbers = #tpu.dot_dimension_numbers<[1], [0], [0], [1], [0, 0, 1, 1], [], []>} : vector<8x128xbf16>, vector<128x128xbf16>, vector<8x128xf32> -> vector<8x128xf32>
    %c0_3 = arith.constant 0 : index
    %c0_4 = arith.constant 0 : index
    %3 = vector.load %arg3[%c0_3, %c0_4] : memref<1x128xf32, #tpu.memory_space<vmem>>, vector<1x128xf32>
    %4 = vector.broadcast %3 : vector<1x128xf32> to vector<8x128xf32>
    %5 = arith.addf %2, %4 : vector<8x128xf32>
    %cst_5 = arith.constant 0.000000e+00 : f32
    %6 = vector.broadcast %cst_5 : f32 to vector<8x128xf32>
    %7 = arith.cmpf oge, %5, %6 : vector<8x128xf32>
    %cst_6 = arith.constant 2.000000e-02 : f32
    %8 = vector.broadcast %cst_6 : f32 to vector<8x128xf32>
    %9 = arith.mulf %8, %5 : vector<8x128xf32>
    %10 = arith.select %7, %5, %9 : vector<8x128xi1>, vector<8x128xf32>
    %c0_7 = arith.constant 0 : index
    %c0_8 = arith.constant 0 : index
    %11 = vector.load %arg4[%c0_7, %c0_8] : memref<1x128xf32, #tpu.memory_space<vmem>>, vector<1x128xf32>
    %c0_9 = arith.constant 0 : index
    %c0_10 = arith.constant 0 : index
    %12 = vector.load %arg5[%c0_9, %c0_10] : memref<1x128xf32, #tpu.memory_space<vmem>>, vector<1x128xf32>
    %cst_11 = arith.constant dense<0.000000e+00> : vector<8xf32>
    %13 = vector.multi_reduction <add>, %10, %cst_11 [1] : vector<8x128xf32> to vector<8xf32>
    %14 = vector.shape_cast %13 : vector<8xf32> to vector<8x1xf32>
    %cst_12 = arith.constant 1.280000e+02 : f32
    %15 = vector.broadcast %cst_12 : f32 to vector<8x1xf32>
    %16 = arith.divf %14, %15 : vector<8x1xf32>
    %17 = vector.broadcast %16 : vector<8x1xf32> to vector<8x128xf32>
    %18 = arith.subf %10, %17 : vector<8x128xf32>
    %19 = arith.mulf %18, %18 : vector<8x128xf32>
    %cst_13 = arith.constant dense<0.000000e+00> : vector<8xf32>
    %20 = vector.multi_reduction <add>, %19, %cst_13 [1] : vector<8x128xf32> to vector<8xf32>
    %21 = vector.shape_cast %20 : vector<8xf32> to vector<8x1xf32>
    %cst_14 = arith.constant 1.280000e+02 : f32
    %22 = vector.broadcast %cst_14 : f32 to vector<8x1xf32>
    %23 = arith.divf %21, %22 : vector<8x1xf32>
    %cst_15 = arith.constant 9.99999974E-6 : f32
    %24 = vector.broadcast %cst_15 : f32 to vector<8x1xf32>
    %25 = arith.addf %23, %24 : vector<8x1xf32>
    %26 = math.rsqrt %25 : vector<8x1xf32>
    %27 = vector.broadcast %26 : vector<8x1xf32> to vector<8x128xf32>
    %28 = arith.mulf %18, %27 : vector<8x128xf32>
    %29 = vector.broadcast %11 : vector<1x128xf32> to vector<8x128xf32>
    %30 = arith.mulf %28, %29 : vector<8x128xf32>
    %31 = vector.broadcast %12 : vector<1x128xf32> to vector<8x128xf32>
    %32 = arith.addf %30, %31 : vector<8x128xf32>
    %33 = arith.truncf %32 : vector<8x128xf32> to vector<8x128xbf16>
    %c0_16 = arith.constant 0 : index
    %c0_17 = arith.constant 0 : index
    %34 = vector.load %arg6[%c0_16, %c0_17] : memref<128x256xbf16, #tpu.memory_space<vmem>>, vector<128x256xbf16>
    %cst_18 = arith.constant dense<0.000000e+00> : vector<8x256xf32>
    %35 = tpu.matmul %33, %34, %cst_18 {dimension_numbers = #tpu.dot_dimension_numbers<[1], [0], [0], [1], [0, 0, 1, 1], [], []>} : vector<8x128xbf16>, vector<128x256xbf16>, vector<8x256xf32> -> vector<8x256xf32>
    %c0_19 = arith.constant 0 : index
    %c0_20 = arith.constant 0 : index
    %36 = vector.load %arg7[%c0_19, %c0_20] : memref<1x256xf32, #tpu.memory_space<vmem>>, vector<1x256xf32>
    %37 = vector.broadcast %36 : vector<1x256xf32> to vector<8x256xf32>
    %38 = arith.addf %35, %37 : vector<8x256xf32>
    %cst_21 = arith.constant 0.000000e+00 : f32
    %39 = vector.broadcast %cst_21 : f32 to vector<8x256xf32>
    %40 = arith.cmpf oge, %38, %39 : vector<8x256xf32>
    %cst_22 = arith.constant 2.000000e-02 : f32
    %41 = vector.broadcast %cst_22 : f32 to vector<8x256xf32>
    %42 = arith.mulf %41, %38 : vector<8x256xf32>
    %43 = arith.select %40, %38, %42 : vector<8x256xi1>, vector<8x256xf32>
    %c0_23 = arith.constant 0 : index
    %c0_24 = arith.constant 0 : index
    %44 = vector.load %arg8[%c0_23, %c0_24] : memref<1x256xf32, #tpu.memory_space<vmem>>, vector<1x256xf32>
    %c0_25 = arith.constant 0 : index
    %c0_26 = arith.constant 0 : index
    %45 = vector.load %arg9[%c0_25, %c0_26] : memref<1x256xf32, #tpu.memory_space<vmem>>, vector<1x256xf32>
    %cst_27 = arith.constant dense<0.000000e+00> : vector<8xf32>
    %46 = vector.multi_reduction <add>, %43, %cst_27 [1] : vector<8x256xf32> to vector<8xf32>
    %47 = vector.shape_cast %46 : vector<8xf32> to vector<8x1xf32>
    %cst_28 = arith.constant 2.560000e+02 : f32
    %48 = vector.broadcast %cst_28 : f32 to vector<8x1xf32>
    %49 = arith.divf %47, %48 : vector<8x1xf32>
    %50 = vector.broadcast %49 : vector<8x1xf32> to vector<8x256xf32>
    %51 = arith.subf %43, %50 : vector<8x256xf32>
    %52 = arith.mulf %51, %51 : vector<8x256xf32>
    %cst_29 = arith.constant dense<0.000000e+00> : vector<8xf32>
    %53 = vector.multi_reduction <add>, %52, %cst_29 [1] : vector<8x256xf32> to vector<8xf32>
    %54 = vector.shape_cast %53 : vector<8xf32> to vector<8x1xf32>
    %cst_30 = arith.constant 2.560000e+02 : f32
    %55 = vector.broadcast %cst_30 : f32 to vector<8x1xf32>
    %56 = arith.divf %54, %55 : vector<8x1xf32>
    %cst_31 = arith.constant 9.99999974E-6 : f32
    %57 = vector.broadcast %cst_31 : f32 to vector<8x1xf32>
    %58 = arith.addf %56, %57 : vector<8x1xf32>
    %59 = math.rsqrt %58 : vector<8x1xf32>
    %60 = vector.broadcast %59 : vector<8x1xf32> to vector<8x256xf32>
    %61 = arith.mulf %51, %60 : vector<8x256xf32>
    %62 = vector.broadcast %44 : vector<1x256xf32> to vector<8x256xf32>
    %63 = arith.mulf %61, %62 : vector<8x256xf32>
    %64 = vector.broadcast %45 : vector<1x256xf32> to vector<8x256xf32>
    %65 = arith.addf %63, %64 : vector<8x256xf32>
    %66 = arith.truncf %65 : vector<8x256xf32> to vector<8x256xbf16>
    %c0_32 = arith.constant 0 : index
    %c0_33 = arith.constant 0 : index
    %67 = vector.load %arg10[%c0_32, %c0_33] : memref<256x512xbf16, #tpu.memory_space<vmem>>, vector<256x512xbf16>
    %cst_34 = arith.constant dense<0.000000e+00> : vector<8x512xf32>
    %68 = tpu.matmul %66, %67, %cst_34 {dimension_numbers = #tpu.dot_dimension_numbers<[1], [0], [0], [1], [0, 0, 1, 1], [], []>} : vector<8x256xbf16>, vector<256x512xbf16>, vector<8x512xf32> -> vector<8x512xf32>
    %c0_35 = arith.constant 0 : index
    %c0_36 = arith.constant 0 : index
    %69 = vector.load %arg11[%c0_35, %c0_36] : memref<1x512xf32, #tpu.memory_space<vmem>>, vector<1x512xf32>
    %70 = vector.broadcast %69 : vector<1x512xf32> to vector<8x512xf32>
    %71 = arith.addf %68, %70 : vector<8x512xf32>
    %cst_37 = arith.constant 0.000000e+00 : f32
    %72 = vector.broadcast %cst_37 : f32 to vector<8x512xf32>
    %73 = arith.cmpf oge, %71, %72 : vector<8x512xf32>
    %cst_38 = arith.constant 2.000000e-02 : f32
    %74 = vector.broadcast %cst_38 : f32 to vector<8x512xf32>
    %75 = arith.mulf %74, %71 : vector<8x512xf32>
    %76 = arith.select %73, %71, %75 : vector<8x512xi1>, vector<8x512xf32>
    %c0_39 = arith.constant 0 : index
    %c0_40 = arith.constant 0 : index
    %77 = vector.load %arg12[%c0_39, %c0_40] : memref<1x512xf32, #tpu.memory_space<vmem>>, vector<1x512xf32>
    %c0_41 = arith.constant 0 : index
    %c0_42 = arith.constant 0 : index
    %78 = vector.load %arg13[%c0_41, %c0_42] : memref<1x512xf32, #tpu.memory_space<vmem>>, vector<1x512xf32>
    %cst_43 = arith.constant dense<0.000000e+00> : vector<8xf32>
    %79 = vector.multi_reduction <add>, %76, %cst_43 [1] : vector<8x512xf32> to vector<8xf32>
    %80 = vector.shape_cast %79 : vector<8xf32> to vector<8x1xf32>
    %cst_44 = arith.constant 5.120000e+02 : f32
    %81 = vector.broadcast %cst_44 : f32 to vector<8x1xf32>
    %82 = arith.divf %80, %81 : vector<8x1xf32>
    %83 = vector.broadcast %82 : vector<8x1xf32> to vector<8x512xf32>
    %84 = arith.subf %76, %83 : vector<8x512xf32>
    %85 = arith.mulf %84, %84 : vector<8x512xf32>
    %cst_45 = arith.constant dense<0.000000e+00> : vector<8xf32>
    %86 = vector.multi_reduction <add>, %85, %cst_45 [1] : vector<8x512xf32> to vector<8xf32>
    %87 = vector.shape_cast %86 : vector<8xf32> to vector<8x1xf32>
    %cst_46 = arith.constant 5.120000e+02 : f32
    %88 = vector.broadcast %cst_46 : f32 to vector<8x1xf32>
    %89 = arith.divf %87, %88 : vector<8x1xf32>
    %cst_47 = arith.constant 9.99999974E-6 : f32
    %90 = vector.broadcast %cst_47 : f32 to vector<8x1xf32>
    %91 = arith.addf %89, %90 : vector<8x1xf32>
    %92 = math.rsqrt %91 : vector<8x1xf32>
    %93 = vector.broadcast %92 : vector<8x1xf32> to vector<8x512xf32>
    %94 = arith.mulf %84, %93 : vector<8x512xf32>
    %95 = vector.broadcast %77 : vector<1x512xf32> to vector<8x512xf32>
    %96 = arith.mulf %94, %95 : vector<8x512xf32>
    %97 = vector.broadcast %78 : vector<1x512xf32> to vector<8x512xf32>
    %98 = arith.addf %96, %97 : vector<8x512xf32>
    %99 = arith.truncf %98 : vector<8x512xf32> to vector<8x512xbf16>
    %c0_48 = arith.constant 0 : index
    %c0_49 = arith.constant 0 : index
    %100 = vector.load %arg14[%c0_48, %c0_49] : memref<512x896xbf16, #tpu.memory_space<vmem>>, vector<512x896xbf16>
    %cst_50 = arith.constant dense<0.000000e+00> : vector<8x896xf32>
    %101 = tpu.matmul %99, %100, %cst_50 {dimension_numbers = #tpu.dot_dimension_numbers<[1], [0], [0], [1], [0, 0, 1, 1], [], []>} : vector<8x512xbf16>, vector<512x896xbf16>, vector<8x896xf32> -> vector<8x896xf32>
    %c0_51 = arith.constant 0 : index
    %c0_52 = arith.constant 0 : index
    %102 = vector.load %arg15[%c0_51, %c0_52] : memref<1x896xf32, #tpu.memory_space<vmem>>, vector<1x896xf32>
    %103 = vector.broadcast %102 : vector<1x896xf32> to vector<8x896xf32>
    %104 = arith.addf %101, %103 : vector<8x896xf32>
    %105 = math.tanh %104 : vector<8x896xf32>
    %c0_53 = arith.constant 0 : index
    %c0_54 = arith.constant 0 : index
    %106 = vector.load %arg16[%c0_53, %c0_54] : memref<8x896xf32, #tpu.memory_space<vmem>>, vector<8x896xf32>
    tpu.vector_store %arg16[%c0_53, %c0_54], %105 {strides = array<i32>} : memref<8x896xf32, #tpu.memory_space<vmem>>, vector<8x896xf32>,
    return
  }
  func.func @transform_0(%arg0: i32) -> (i32, i32) {
    %c0_i32 = arith.constant 0 : i32
    %c0_i32_0 = arith.constant 0 : i32
    return %arg0, %c0_i32 : i32, i32
  }
  func.func @transform_1(%arg0: i32) -> (i32, i32) {
    %c0_i32 = arith.constant 0 : i32
    %c0_i32_0 = arith.constant 0 : i32
    %c0_i32_1 = arith.constant 0 : i32
    return %c0_i32, %c0_i32_0 : i32, i32
  }
  func.func @transform_2(%arg0: i32) -> (i32, i32) {
    %c0_i32 = arith.constant 0 : i32
    %c0_i32_0 = arith.constant 0 : i32
    %c0_i32_1 = arith.constant 0 : i32
    return %c0_i32, %c0_i32_0 : i32, i32
  }
  func.func @transform_3(%arg0: i32) -> (i32, i32) {
    %c0_i32 = arith.constant 0 : i32
    %c0_i32_0 = arith.constant 0 : i32
    %c0_i32_1 = arith.constant 0 : i32
    return %c0_i32, %c0_i32_0 : i32, i32
  }
  func.func @transform_4(%arg0: i32) -> (i32, i32) {
    %c0_i32 = arith.constant 0 : i32
    %c0_i32_0 = arith.constant 0 : i32
    %c0_i32_1 = arith.constant 0 : i32
    return %c0_i32, %c0_i32_0 : i32, i32
  }
  func.func @transform_5(%arg0: i32) -> (i32, i32) {
    %c0_i32 = arith.constant 0 : i32
    %c0_i32_0 = arith.constant 0 : i32
    %c0_i32_1 = arith.constant 0 : i32
    return %c0_i32, %c0_i32_0 : i32, i32
  }
  func.func @transform_6(%arg0: i32) -> (i32, i32) {
    %c0_i32 = arith.constant 0 : i32
    %c0_i32_0 = arith.constant 0 : i32
    %c0_i32_1 = arith.constant 0 : i32
    return %c0_i32, %c0_i32_0 : i32, i32
  }
  func.func @transform_7(%arg0: i32) -> (i32, i32) {
    %c0_i32 = arith.constant 0 : i32
    %c0_i32_0 = arith.constant 0 : i32
    %c0_i32_1 = arith.constant 0 : i32
    return %c0_i32, %c0_i32_0 : i32, i32
  }
  func.func @transform_8(%arg0: i32) -> (i32, i32) {
    %c0_i32 = arith.constant 0 : i32
    %c0_i32_0 = arith.constant 0 : i32
    %c0_i32_1 = arith.constant 0 : i32
    return %c0_i32, %c0_i32_0 : i32, i32
  }
  func.func @transform_9(%arg0: i32) -> (i32, i32) {
    %c0_i32 = arith.constant 0 : i32
    %c0_i32_0 = arith.constant 0 : i32
    %c0_i32_1 = arith.constant 0 : i32
    return %c0_i32, %c0_i32_0 : i32, i32
  }
  func.func @transform_10(%arg0: i32) -> (i32, i32) {
    %c0_i32 = arith.constant 0 : i32
    %c0_i32_0 = arith.constant 0 : i32
    %c0_i32_1 = arith.constant 0 : i32
    return %c0_i32, %c0_i32_0 : i32, i32
  }
  func.func @transform_11(%arg0: i32) -> (i32, i32) {
    %c0_i32 = arith.constant 0 : i32
    %c0_i32_0 = arith.constant 0 : i32
    %c0_i32_1 = arith.constant 0 : i32
    return %c0_i32, %c0_i32_0 : i32, i32
  }
  func.func @transform_12(%arg0: i32) -> (i32, i32) {
    %c0_i32 = arith.constant 0 : i32
    %c0_i32_0 = arith.constant 0 : i32
    %c0_i32_1 = arith.constant 0 : i32
    return %c0_i32, %c0_i32_0 : i32, i32
  }
  func.func @transform_13(%arg0: i32) -> (i32, i32) {
    %c0_i32 = arith.constant 0 : i32
    %c0_i32_0 = arith.constant 0 : i32
    %c0_i32_1 = arith.constant 0 : i32
    return %c0_i32, %c0_i32_0 : i32, i32
  }
  func.func @transform_14(%arg0: i32) -> (i32, i32) {
    %c0_i32 = arith.constant 0 : i32
    %c0_i32_0 = arith.constant 0 : i32
    %c0_i32_1 = arith.constant 0 : i32
    return %c0_i32, %c0_i32_0 : i32, i32
  }
  func.func @transform_15(%arg0: i32) -> (i32, i32) {
    %c0_i32 = arith.constant 0 : i32
    %c0_i32_0 = arith.constant 0 : i32
    return %arg0, %c0_i32 : i32, i32
  }
}

</mosaic_0001>

<llo_original>
// kernel: generator_forward.1
$region0: #{generator_forward.1}
  #allocation0 [shape = 'u32[]', space=smem, size = 0x4, offset = 0x4, fixed_abs, tag = 'smem constant byte address 0x4 - core index']
  #allocation1 [shape = 'u32[72,128]{1,0:T(1,128)}', space=vmem, size = 0x9000, scoped, tag = 'internal scratch']
  %s0 = inlined_call_operand.vmem [shape: bf16[8,128], index: 0, kind: input, shape index: {}]
  %s1 = inlined_call_operand.hbm [shape: bf16[128,128], index: 1, kind: input, shape index: {}]
  %s2 = inlined_call_operand.hbm [shape: f32[1,128], index: 2, kind: input, shape index: {}]
  %s3 = inlined_call_operand.hbm [shape: f32[1,128], index: 3, kind: input, shape index: {}]
  %s4 = inlined_call_operand.hbm [shape: f32[1,128], index: 4, kind: input, shape index: {}]
  %s5 = inlined_call_operand.hbm [shape: bf16[128,256], index: 5, kind: input, shape index: {}]
  %s6 = inlined_call_operand.vmem [shape: f32[1,256], index: 6, kind: input, shape index: {}]
  %s7 = inlined_call_operand.vmem [shape: f32[1,256], index: 7, kind: input, shape index: {}]
  %s8 = inlined_call_operand.vmem [shape: f32[1,256], index: 8, kind: input, shape index: {}]
  %s9 = inlined_call_operand.hbm [shape: bf16[256,512], index: 9, kind: input, shape index: {}]
  %s10 = inlined_call_operand.vmem [shape: f32[1,512], index: 10, kind: input, shape index: {}]
  %s11 = inlined_call_operand.vmem [shape: f32[1,512], index: 11, kind: input, shape index: {}]
  %s12 = inlined_call_operand.vmem [shape: f32[1,512], index: 12, kind: input, shape index: {}]
  %s13 = inlined_call_operand.hbm [shape: bf16[512,896], index: 13, kind: input, shape index: {}]
  %s14 = inlined_call_operand.vmem [shape: f32[1,896], index: 14, kind: input, shape index: {}]
  %s15 = inlined_call_operand.hbm [shape: f32[8,896], index: 15, kind: output, shape index: {}]
  %s16 = sld [smem:[#allocation0]]
  $region98: #{generator_forward.1} parent=0
    _
  %s18 = ssub.s32 1, %s16
  %s19 = scalar_select 0, %s18, %s16
  $region1: #{generator_forward.1} parent=0
    #allocation2 [shape = 'u8[32768]{0}', space=vmem, size = 0x8000, scoped, tag = 'input window, operand 1, single buffered']
    #allocation3 [shape = 's32[1]{0}', space=sflag, size = 0x4, scoped, tag = 'scoped memory for generator_forward.1']
    #allocation4 [shape = 's32[1]{0}', space=sflag, size = 0x4, scoped, tag = 'scoped memory for generator_forward.1']
    #allocation5 [shape = 'u8[512]{0}', space=vmem, size = 0x400, scoped, tag = 'input window, operand 2, single buffered']
    #allocation6 [shape = 's32[1]{0}', space=sflag, size = 0x4, scoped, tag = 'scoped memory for generator_forward.1']
    #allocation7 [shape = 'u8[512]{0}', space=vmem, size = 0x400, scoped, tag = 'input window, operand 3, single buffered']
    #allocation8 [shape = 'u8[512]{0}', space=vmem, size = 0x400, scoped, tag = 'input window, operand 4, single buffered']
    #allocation9 [shape = 's32[1]{0}', space=sflag, size = 0x4, scoped, tag = 'scoped memory for generator_forward.1']
    #allocation10 [shape = 'u8[65536]{0}', space=vmem, size = 0x10000, scoped, tag = 'input window, operand 5, single buffered']
    #allocation11 [shape = 'u8[262144]{0}', space=vmem, size = 0x40000, scoped, tag = 'input window, operand 9, single buffered']
    #allocation12 [shape = 's32[1]{0}', space=sflag, size = 0x4, scoped, tag = 'scoped memory for generator_forward.1']
    #allocation13 [shape = 'u8[917504]{0}', space=vmem, size = 0xe0000, scoped, tag = 'input window, operand 13, single buffered']
    #allocation14 [shape = 'u8[28672]{0}', space=vmem, size = 0x7000, scoped, tag = 'output window, operand 0, single buffered']
    %20 = vsyncpa [#allocation3], 0
    %21 = vsyncpa [#allocation6], 0
    %22 = vsyncpa [#allocation9], 0
    %23 = vsyncpa [#allocation12], 0
    %24 = vsyncpa [#allocation4], 0
    // Predicated region
    $region2: #{generator_forward.1} parent=1 // pred_check
      _
    $region3: #{generator_forward.1} parent=1 // pred_check_branch
      %26 = sbr.rel (0) target = $region5
    $region4: #{generator_forward.1} parent=1 // pred_region
      _
    $region5: #{generator_forward.1} parent=1 // pred_fallthru
      _
    // Predicated region
    $region6: #{generator_forward.1} parent=1 // pred_check
      _
    $region7: #{generator_forward.1} parent=1 // pred_check_branch
      %28 = sbr.rel (0) target = $region9
    $region8: #{generator_forward.1} parent=1 // pred_region
      %30 = vsyncadd [#allocation3], 0
      %s31 = sshll.u32 %s1, 4
      %s32 = int_to_ptr.hbm [resolvable:$true] %s31
      %s33 = sshll.u32 [#allocation2], 4
      %s34 = int_to_ptr.vmem [resolvable:$true] %s33
      %39 = dma.hbm_to_vmem [thread:$0]  %s32, 1024, %s34, [#allocation3], 64, 64, 4
    $region9: #{generator_forward.1} parent=1 // pred_fallthru
      _
    // Predicated region
    $region10: #{generator_forward.1} parent=1 // pred_check
      _
    $region11: #{generator_forward.1} parent=1 // pred_check_branch
      %41 = sbr.rel (0) target = $region13
    $region12: #{generator_forward.1} parent=1 // pred_region
      %43 = vsyncadd [#allocation6], 0
      %s45 = sshll.u32 %s2, 4
      %s46 = int_to_ptr.hbm [resolvable:$true] %s45
      %s47 = sshll.u32 [#allocation5], 4
      %s48 = int_to_ptr.vmem [resolvable:$true] %s47
      %50 = dma.hbm_to_vmem [thread:$0]  %s46, 16, %s48, [#allocation6]
    $region13: #{generator_forward.1} parent=1 // pred_fallthru
      _
    // Predicated region
    $region14: #{generator_forward.1} parent=1 // pred_check
      _
    $region15: #{generator_forward.1} parent=1 // pred_check_branch
      %52 = sbr.rel (0) target = $region17
    $region16: #{generator_forward.1} parent=1 // pred_region
      %54 = vsyncadd [#allocation6], 0
      %s56 = sshll.u32 %s3, 4
      %s57 = int_to_ptr.hbm [resolvable:$true] %s56
      %s58 = sshll.u32 [#allocation7], 4
      %s59 = int_to_ptr.vmem [resolvable:$true] %s58
      %61 = dma.hbm_to_vmem [thread:$0]  %s57, 16, %s59, [#allocation6]
    $region17: #{generator_forward.1} parent=1 // pred_fallthru
      _
    // Predicated region
    $region18: #{generator_forward.1} parent=1 // pred_check
      _
    $region19: #{generator_forward.1} parent=1 // pred_check_branch
      %63 = sbr.rel (0) target = $region21
    $region20: #{generator_forward.1} parent=1 // pred_region
      %65 = vsyncadd [#allocation9], 0
      %s67 = sshll.u32 %s4, 4
      %s68 = int_to_ptr.hbm [resolvable:$true] %s67
      %s69 = sshll.u32 [#allocation8], 4
      %s70 = int_to_ptr.vmem [resolvable:$true] %s69
      %72 = dma.hbm_to_vmem [thread:$0]  %s68, 16, %s70, [#allocation9]
    $region21: #{generator_forward.1} parent=1 // pred_fallthru
      _
    // Predicated region
    $region22: #{generator_forward.1} parent=1 // pred_check
      _
    $region23: #{generator_forward.1} parent=1 // pred_check_branch
      %74 = sbr.rel (0) target = $region25
    $region24: #{generator_forward.1} parent=1 // pred_region
      %76 = vsyncadd [#allocation9], 0
      %s77 = sshll.u32 %s5, 4
      %s78 = int_to_ptr.hbm [resolvable:$true] %s77
      %s79 = sshll.u32 [#allocation10], 4
      %s80 = int_to_ptr.vmem [resolvable:$true] %s79
      %85 = dma.hbm_to_vmem [thread:$0]  %s78, 2048, %s80, [#allocation9], 128, 128, 8
    $region25: #{generator_forward.1} parent=1 // pred_fallthru
      _
    // Predicated region
    $region26: #{generator_forward.1} parent=1 // pred_check
      _
    $region27: #{generator_forward.1} parent=1 // pred_check_branch
      %87 = sbr.rel (0) target = $region29
    $region28: #{generator_forward.1} parent=1 // pred_region
      _
    $region29: #{generator_forward.1} parent=1 // pred_fallthru
      _
    // Predicated region
    $region30: #{generator_forward.1} parent=1 // pred_check
      _
    $region31: #{generator_forward.1} parent=1 // pred_check_branch
      %89 = sbr.rel (0) target = $region33
    $region32: #{generator_forward.1} parent=1 // pred_region
      _
    $region33: #{generator_forward.1} parent=1 // pred_fallthru
      _
    // Predicated region
    $region34: #{generator_forward.1} parent=1 // pred_check
      _
    $region35: #{generator_forward.1} parent=1 // pred_check_branch
      %91 = sbr.rel (0) target = $region37
    $region36: #{generator_forward.1} parent=1 // pred_region
      _
    $region37: #{generator_forward.1} parent=1 // pred_fallthru
      _
    // Predicated region
    $region38: #{generator_forward.1} parent=1 // pred_check
      _
    $region39: #{generator_forward.1} parent=1 // pred_check_branch
      %93 = sbr.rel (0) target = $region41
    $region40: #{generator_forward.1} parent=1 // pred_region
      %95 = vsyncadd [#allocation12], 0
      %s96 = sshll.u32 %s9, 4
      %s97 = int_to_ptr.hbm [resolvable:$true] %s96
      %s98 = sshll.u32 [#allocation11], 4
      %s99 = int_to_ptr.vmem [resolvable:$true] %s98
      %104 = dma.hbm_to_vmem [thread:$0]  %s97, 8192, %s99, [#allocation12], 256, 256, 16
    $region41: #{generator_forward.1} parent=1 // pred_fallthru
      _
    // Predicated region
    $region42: #{generator_forward.1} parent=1 // pred_check
      _
    $region43: #{generator_forward.1} parent=1 // pred_check_branch
      %106 = sbr.rel (0) target = $region45
    $region44: #{generator_forward.1} parent=1 // pred_region
      _
    $region45: #{generator_forward.1} parent=1 // pred_fallthru
      _
    // Predicated region
    $region46: #{generator_forward.1} parent=1 // pred_check
      _
    $region47: #{generator_forward.1} parent=1 // pred_check_branch
      %108 = sbr.rel (0) target = $region49
    $region48: #{generator_forward.1} parent=1 // pred_region
      _
    $region49: #{generator_forward.1} parent=1 // pred_fallthru
      _
    // Predicated region
    $region50: #{generator_forward.1} parent=1 // pred_check
      _
    $region51: #{generator_forward.1} parent=1 // pred_check_branch
      %110 = sbr.rel (0) target = $region53
    $region52: #{generator_forward.1} parent=1 // pred_region
      _
    $region53: #{generator_forward.1} parent=1 // pred_fallthru
      _
    // Predicated region
    $region54: #{generator_forward.1} parent=1 // pred_check
      _
    $region55: #{generator_forward.1} parent=1 // pred_check_branch
      %112 = sbr.rel (0) target = $region57
    $region56: #{generator_forward.1} parent=1 // pred_region
      %114 = vsyncadd [#allocation12], 0
      %s115 = sshll.u32 %s13, 4
      %s116 = int_to_ptr.hbm [resolvable:$true] %s115
      %s117 = sshll.u32 [#allocation13], 4
      %s118 = int_to_ptr.vmem [resolvable:$true] %s117
      %123 = dma.hbm_to_vmem [thread:$0]  %s116, 28672, %s118, [#allocation12], 448, 448, 28
    $region57: #{generator_forward.1} parent=1 // pred_fallthru
      _
    // Predicated region
    $region58: #{generator_forward.1} parent=1 // pred_check
      _
    $region59: #{generator_forward.1} parent=1 // pred_check_branch
      %125 = sbr.rel (0) target = $region61
    $region60: #{generator_forward.1} parent=1 // pred_region
      _
    $region61: #{generator_forward.1} parent=1 // pred_fallthru
      _
    // Predicated region
    $region62: #{generator_forward.1} parent=1 // pred_check
      _
    $region63: #{generator_forward.1} parent=1 // pred_check_branch
      %127 = sbr.rel (0) target = $region65
    $region64: #{generator_forward.1} parent=1 // pred_region
      %129 = dma.done [#allocation3], 1024
    $region65: #{generator_forward.1} parent=1 // pred_fallthru
      _
    // Predicated region
    $region66: #{generator_forward.1} parent=1 // pred_check
      _
    $region67: #{generator_forward.1} parent=1 // pred_check_branch
      %131 = sbr.rel (0) target = $region69
    $region68: #{generator_forward.1} parent=1 // pred_region
      %133 = dma.done [#allocation6], 16
    $region69: #{generator_forward.1} parent=1 // pred_fallthru
      _
    // Predicated region
    $region70: #{generator_forward.1} parent=1 // pred_check
      _
    $region71: #{generator_forward.1} parent=1 // pred_check_branch
      %135 = sbr.rel (0) target = $region73
    $region72: #{generator_forward.1} parent=1 // pred_region
      %137 = dma.done [#allocation6], 16
    $region73: #{generator_forward.1} parent=1 // pred_fallthru
      _
    // Predicated region
    $region74: #{generator_forward.1} parent=1 // pred_check
      _
    $region75: #{generator_forward.1} parent=1 // pred_check_branch
      %139 = sbr.rel (0) target = $region77
    $region76: #{generator_forward.1} parent=1 // pred_region
      %141 = dma.done [#allocation9], 16
    $region77: #{generator_forward.1} parent=1 // pred_fallthru
      _
    // Predicated region
    $region78: #{generator_forward.1} parent=1 // pred_check
      _
    $region79: #{generator_forward.1} parent=1 // pred_check_branch
      %143 = sbr.rel (0) target = $region81
    $region80: #{generator_forward.1} parent=1 // pred_region
      %145 = dma.done [#allocation9], 2048
    $region81: #{generator_forward.1} parent=1 // pred_fallthru
      _
    // Predicated region
    $region82: #{generator_forward.1} parent=1 // pred_check
      _
    $region83: #{generator_forward.1} parent=1 // pred_check_branch
      %147 = sbr.rel (0) target = $region85
    $region84: #{generator_forward.1} parent=1 // pred_region
      %149 = dma.done [#allocation12], 8192
    $region85: #{generator_forward.1} parent=1 // pred_fallthru
      _
    // Predicated region
    $region86: #{generator_forward.1} parent=1 // pred_check
      _
    $region87: #{generator_forward.1} parent=1 // pred_check_branch
      %151 = sbr.rel (0) target = $region89
    $region88: #{generator_forward.1} parent=1 // pred_region
      %153 = dma.done [#allocation12], 28672
    $region89: #{generator_forward.1} parent=1 // pred_fallthru
      _
    %v154 = vld [vmem:[%s0] sm:$0xf]
    %v155 = vld [vmem:[#allocation2] sm:$0xf]
    %v156 = vld [vmem:[#allocation2 + $0x4] sm:$0xf]
    %v157 = vld [vmem:[#allocation2 + $0x8] sm:$0xf]
    %v158 = vld [vmem:[#allocation2 + $0xc] sm:$0xf]
    %v159 = vld [vmem:[#allocation2 + $0x10] sm:$0xf]
    %v160 = vld [vmem:[#allocation2 + $0x14] sm:$0xf]
    %v161 = vld [vmem:[#allocation2 + $0x18] sm:$0xf]
    %v162 = vld [vmem:[#allocation2 + $0x1c] sm:$0xf]
    %v163 = vld [vmem:[#allocation2 + $0x20] sm:$0xf]
    %v164 = vld [vmem:[#allocation2 + $0x24] sm:$0xf]
    %v165 = vld [vmem:[#allocation2 + $0x28] sm:$0xf]
    %v166 = vld [vmem:[#allocation2 + $0x2c] sm:$0xf]
    %v167 = vld [vmem:[#allocation2 + $0x30] sm:$0xf]
    %v168 = vld [vmem:[#allocation2 + $0x34] sm:$0xf]
    %v169 = vld [vmem:[#allocation2 + $0x38] sm:$0xf]
    %v170 = vld [vmem:[#allocation2 + $0x3c] sm:$0xf]
    %v171 = vld [vmem:[#allocation5] sm:$0x1]
    %v173 = vperm.slane %v171, 0
    %v191 = vunpack.c.l.b16 %v155
    %v192 = vunpack.c.l.b16 %v156
    %v193 = vunpack.c.l.b16 %v157
    %v194 = vunpack.c.l.b16 %v158
    %v195 = vunpack.c.l.b16 %v159
    %v196 = vunpack.c.l.b16 %v160
    %v197 = vunpack.c.l.b16 %v161
    %v198 = vunpack.c.l.b16 %v162
    %v199 = vunpack.c.l.b16 %v163
    %v200 = vunpack.c.l.b16 %v164
    %v201 = vunpack.c.l.b16 %v165
    %v202 = vunpack.c.l.b16 %v166
    %v203 = vunpack.c.l.b16 %v167
    %v204 = vunpack.c.l.b16 %v168
    %v205 = vunpack.c.l.b16 %v169
    %v206 = vunpack.c.l.b16 %v170
    %v207 = vpack.c.b16 %v192, %v191
    %v208 = vpack.c.b16 %v194, %v193
    %v209 = vpack.c.b16 %v196, %v195
    %v210 = vpack.c.b16 %v198, %v197
    %v211 = vpack.c.b16 %v200, %v199
    %v212 = vpack.c.b16 %v202, %v201
    %v213 = vpack.c.b16 %v204, %v203
    %v214 = vpack.c.b16 %v206, %v205
    %223 = vmatpush.bf16.msra.mxu0 %v214
    %224 = vmatpush.bf16.msra.mxu0 %v213
    %225 = vmatpush.bf16.msra.mxu0 %v212
    %226 = vmatpush.bf16.msra.mxu0 %v211
    %227 = vmatpush.bf16.msra.mxu0 %v210
    %228 = vmatpush.bf16.msra.mxu0 %v209
    %229 = vmatpush.bf16.msra.mxu0 %v208
    %230 = vmatpush.bf16.msra.mxu0 %v207
    %231 = vmatmul.bf16.gmra.mxu0 %v154
    %v232 = vpop.f32.mrf.mxu0
    %v233 = vadd.f32 %v173, %v232
    %v234 = vpop.f32.mrf.mxu0
    %235 = vdwg.mxu0
    %vm236 = vcmp.ge.f32.partialorder %v233, 0.0
    %v237 = vmul.f32 %v233, 0.02
    %v238 = vsel %vm236, %v233, %v237
    %v239 = vld [vmem:[#allocation7] sm:$0x1]
    %v240 = vld [vmem:[#allocation8] sm:$0x1]
    %241 = vadd.xlane.f32.xlu0 %v238
    %v242 = vpop.xlane.xlu0 %241
    %v243 = vrcp.pop 128.0
    %v244 = vmul.f32 128.0, %v243
    %v245 = vsub.f32 1.0, %v244
    %v246 = vmul.f32 %v243, %v245
    %v247 = vadd.f32 %v243, %v246
    %vm248 = vweird.f32 %v243
    %v249 = vsel %vm248, %v243, %v247
    %v250 = vmul.f32 %v242, %v249
    %v251 = vsub.f32 %v238, %v250
    %v252 = vmul.f32 %v251, %v251
    %253 = vadd.xlane.f32.xlu0 %v252
    %v254 = vpop.xlane.xlu0 %253
    %v255 = vmul.f32 %v254, %v249
    %v256 = vadd.f32 %v255, 1e-05
    %v257 = vrsqrt.pop %v256
    %v258 = vmul.f32 %v257, %v256
    %v259 = vmul.f32 %v258, %v257
    %v260 = vmul.f32 0.5, %v259
    %v261 = vsub.f32 1.5, %v260
    %v262 = vmul.f32 %v257, %v261
    %vm263 = vweird.f32 %v256
    %vm264 = vweird.f32 %v257
    %vm265 = vmor %vm263, %vm264
    %v266 = vsel %vm265, %v257, %v262
    %v267 = vmul.f32 %v251, %v266
    %v269 = vperm.slane %v239, 0
    %v271 = vmul.f32 %v267, %v269
    %v273 = vperm.slane %v240, 0
    %v275 = vadd.f32 %v271, %v273
    %v276 = vpack.c.bf16 %v275, %v275
    %v277 = vld [vmem:[#allocation10] sm:$0xff]
    %v278 = vld [vmem:[#allocation10 + $0x8] sm:$0xff]
    %v279 = vld [vmem:[#allocation10 + $0x10] sm:$0xff]
    %v280 = vld [vmem:[#allocation10 + $0x18] sm:$0xff]
    %v281 = vld [vmem:[#allocation10 + $0x20] sm:$0xff]
    %v282 = vld [vmem:[#allocation10 + $0x28] sm:$0xff]
    %v283 = vld [vmem:[#allocation10 + $0x30] sm:$0xff]
    %v284 = vld [vmem:[#allocation10 + $0x38] sm:$0xff]
    %v285 = vld [vmem:[#allocation10 + $0x40] sm:$0xff]
    %v286 = vld [vmem:[#allocation10 + $0x48] sm:$0xff]
    %v287 = vld [vmem:[#allocation10 + $0x50] sm:$0xff]
    %v288 = vld [vmem:[#allocation10 + $0x58] sm:$0xff]
    %v289 = vld [vmem:[#allocation10 + $0x60] sm:$0xff]
    %v290 = vld [vmem:[#allocation10 + $0x68] sm:$0xff]
    %v291 = vld [vmem:[#allocation10 + $0x70] sm:$0xff]
    %v292 = vld [vmem:[#allocation10 + $0x78] sm:$0xff]
    %v293 = vld [vmem:[%s6] sm:$0x3]
    %v295 = vperm.slane %v293, 0
    %v296 = vperm.slane %v293, 1
    %v315 = vunpack.c.l.b16 %v277
    %v316 = vunpack.c.h.b16 %v277
    %v317 = vunpack.c.l.b16 %v278
    %v318 = vunpack.c.h.b16 %v278
    %v319 = vunpack.c.l.b16 %v279
    %v320 = vunpack.c.h.b16 %v279
    %v321 = vunpack.c.l.b16 %v280
    %v322 = vunpack.c.h.b16 %v280
    %v323 = vunpack.c.l.b16 %v281
    %v324 = vunpack.c.h.b16 %v281
    %v325 = vunpack.c.l.b16 %v282
    %v326 = vunpack.c.h.b16 %v282
    %v327 = vunpack.c.l.b16 %v283
    %v328 = vunpack.c.h.b16 %v283
    %v329 = vunpack.c.l.b16 %v284
    %v330 = vunpack.c.h.b16 %v284
    %v331 = vunpack.c.l.b16 %v285
    %v332 = vunpack.c.h.b16 %v285
    %v333 = vunpack.c.l.b16 %v286
    %v334 = vunpack.c.h.b16 %v286
    %v335 = vunpack.c.l.b16 %v287
    %v336 = vunpack.c.h.b16 %v287
    %v337 = vunpack.c.l.b16 %v288
    %v338 = vunpack.c.h.b16 %v288
    %v339 = vunpack.c.l.b16 %v289
    %v340 = vunpack.c.h.b16 %v289
    %v341 = vunpack.c.l.b16 %v290
    %v342 = vunpack.c.h.b16 %v290
    %v343 = vunpack.c.l.b16 %v291
    %v344 = vunpack.c.h.b16 %v291
    %v345 = vunpack.c.l.b16 %v292
    %v346 = vunpack.c.h.b16 %v292
    %v347 = vpack.c.b16 %v317, %v315
    %v348 = vpack.c.b16 %v318, %v316
    %v349 = vpack.c.b16 %v321, %v319
    %v350 = vpack.c.b16 %v322, %v320
    %v351 = vpack.c.b16 %v325, %v323
    %v352 = vpack.c.b16 %v326, %v324
    %v353 = vpack.c.b16 %v329, %v327
    %v354 = vpack.c.b16 %v330, %v328
    %v355 = vpack.c.b16 %v333, %v331
    %v356 = vpack.c.b16 %v334, %v332
    %v357 = vpack.c.b16 %v337, %v335
    %v358 = vpack.c.b16 %v338, %v336
    %v359 = vpack.c.b16 %v341, %v339
    %v360 = vpack.c.b16 %v342, %v340
    %v361 = vpack.c.b16 %v345, %v343
    %v362 = vpack.c.b16 %v346, %v344
    %379 = vmatpush.bf16.msra.mxu0 %v361
    %380 = vmatpush.bf16.msra.mxu0 %v359
    %381 = vmatpush.bf16.msra.mxu0 %v357
    %382 = vmatpush.bf16.msra.mxu0 %v355
    %383 = vmatpush.bf16.msra.mxu0 %v353
    %384 = vmatpush.bf16.msra.mxu0 %v351
    %385 = vmatpush.bf16.msra.mxu0 %v349
    %386 = vmatpush.bf16.msra.mxu0 %v347
    %387 = vmatmul.bf16.gmra.mxu0 %v276
    %v388 = vpop.f32.mrf.mxu0
    %v389 = vadd.f32 %v295, %v388
    %v390 = vpop.f32.mrf.mxu0
    %391 = vdwg.mxu0
    %392 = vmatpush.bf16.msra.mxu0 %v362
    %393 = vmatpush.bf16.msra.mxu0 %v360
    %394 = vmatpush.bf16.msra.mxu0 %v358
    %395 = vmatpush.bf16.msra.mxu0 %v356
    %396 = vmatpush.bf16.msra.mxu0 %v354
    %397 = vmatpush.bf16.msra.mxu0 %v352
    %398 = vmatpush.bf16.msra.mxu0 %v350
    %399 = vmatpush.bf16.msra.mxu0 %v348
    %400 = vmatmul.bf16.gmra.mxu0 %v276
    %v401 = vpop.f32.mrf.mxu0
    %v402 = vadd.f32 %v296, %v401
    %v403 = vpop.f32.mrf.mxu0
    %404 = vdwg.mxu0
    %vm405 = vcmp.ge.f32.partialorder %v389, 0.0
    %vm406 = vcmp.ge.f32.partialorder %v402, 0.0
    %v407 = vmul.f32 %v389, 0.02
    %v408 = vmul.f32 %v402, 0.02
    %v409 = vsel %vm405, %v389, %v407
    %v410 = vsel %vm406, %v402, %v408
    %v411 = vld [vmem:[%s7] sm:$0x3]
    %v412 = vld [vmem:[%s8] sm:$0x3]
    %v413 = vadd.f32 %v409, %v410
    %414 = vadd.xlane.f32.xlu0 %v413
    %v415 = vpop.xlane.xlu0 %414
    %v416 = vrcp.pop 256.0
    %v417 = vmul.f32 256.0, %v416
    %v418 = vsub.f32 1.0, %v417
    %v419 = vmul.f32 %v416, %v418
    %v420 = vadd.f32 %v416, %v419
    %vm421 = vweird.f32 %v416
    %v422 = vsel %vm421, %v416, %v420
    %v423 = vmul.f32 %v415, %v422
    %v424 = vsub.f32 %v409, %v423
    %v425 = vsub.f32 %v410, %v423
    %v426 = vmul.f32 %v424, %v424
    %v427 = vmul.f32 %v425, %v425
    %v428 = vadd.f32 %v426, %v427
    %429 = vadd.xlane.f32.xlu0 %v428
    %v430 = vpop.xlane.xlu0 %429
    %v431 = vmul.f32 %v430, %v422
    %v432 = vadd.f32 %v431, 1e-05
    %v433 = vrsqrt.pop %v432
    %v434 = vmul.f32 %v433, %v432
    %v435 = vmul.f32 %v434, %v433
    %v436 = vmul.f32 0.5, %v435
    %v437 = vsub.f32 1.5, %v436
    %v438 = vmul.f32 %v433, %v437
    %vm439 = vweird.f32 %v432
    %vm440 = vweird.f32 %v433
    %vm441 = vmor %vm439, %vm440
    %v442 = vsel %vm441, %v433, %v438
    %v443 = vmul.f32 %v424, %v442
    %v444 = vmul.f32 %v425, %v442
    %v446 = vperm.slane %v411, 0
    %v447 = vperm.slane %v411, 1
    %v450 = vmul.f32 %v443, %v446
    %v451 = vmul.f32 %v444, %v447
    %v453 = vperm.slane %v412, 0
    %v454 = vperm.slane %v412, 1
    %v457 = vadd.f32 %v450, %v453
    %v458 = vadd.f32 %v451, %v454
    %v459 = vpack.c.bf16 %v457, %v457
    %v460 = vpack.c.bf16 %v458, %v458
    %v461 = vld [vmem:[#allocation11] sm:$0xff]
    %v462 = vld [vmem:[#allocation11 + $0x8] sm:$0xff]
    %v463 = vld [vmem:[#allocation11 + $0x10] sm:$0xff]
    %v464 = vld [vmem:[#allocation11 + $0x18] sm:$0xff]
    %v465 = vld [vmem:[#allocation11 + $0x20] sm:$0xff]
    %v466 = vld [vmem:[#allocation11 + $0x28] sm:$0xff]
    %v467 = vld [vmem:[#allocation11 + $0x30] sm:$0xff]
    %v468 = vld [vmem:[#allocation11 + $0x38] sm:$0xff]
    %v469 = vld [vmem:[#allocation11 + $0x40] sm:$0xff]
    %v470 = vld [vmem:[#allocation11 + $0x48] sm:$0xff]
    %v471 = vld [vmem:[#allocation11 + $0x50] sm:$0xff]
    %v472 = vld [vmem:[#allocation11 + $0x58] sm:$0xff]
    %v473 = vld [vmem:[#allocation11 + $0x60] sm:$0xff]
    %v474 = vld [vmem:[#allocation11 + $0x68] sm:$0xff]
    %v475 = vld [vmem:[#allocation11 + $0x70] sm:$0xff]
    %v476 = vld [vmem:[#allocation11 + $0x78] sm:$0xff]
    %v477 = vld [vmem:[#allocation11 + $0x80] sm:$0xff]
    %v478 = vld [vmem:[#allocation11 + $0x88] sm:$0xff]
    %v479 = vld [vmem:[#allocation11 + $0x90] sm:$0xff]
    %v480 = vld [vmem:[#allocation11 + $0x98] sm:$0xff]
    %v481 = vld [vmem:[#allocation11 + $0xa0] sm:$0xff]
    %v482 = vld [vmem:[#allocation11 + $0xa8] sm:$0xff]
    %v483 = vld [vmem:[#allocation11 + $0xb0] sm:$0xff]
    %v484 = vld [vmem:[#allocation11 + $0xb8] sm:$0xff]
    %v485 = vld [vmem:[#allocation11 + $0xc0] sm:$0xff]
    %v486 = vld [vmem:[#allocation11 + $0xc8] sm:$0xff]
    %v487 = vld [vmem:[#allocation11 + $0xd0] sm:$0xff]
    %v488 = vld [vmem:[#allocation11 + $0xd8] sm:$0xff]
    %v489 = vld [vmem:[#allocation11 + $0xe0] sm:$0xff]
    %v490 = vld [vmem:[#allocation11 + $0xe8] sm:$0xff]
    %v491 = vld [vmem:[#allocation11 + $0xf0] sm:$0xff]
    %v492 = vld [vmem:[#allocation11 + $0xf8] sm:$0xff]
    %v493 = vld [vmem:[#allocation11 + $0x100] sm:$0xff]
    %v494 = vld [vmem:[#allocation11 + $0x108] sm:$0xff]
    %v495 = vld [vmem:[#allocation11 + $0x110] sm:$0xff]
    %v496 = vld [vmem:[#allocation11 + $0x118] sm:$0xff]
    %v497 = vld [vmem:[#allocation11 + $0x120] sm:$0xff]
    %v498 = vld [vmem:[#allocation11 + $0x128] sm:$0xff]
    %v499 = vld [vmem:[#allocation11 + $0x130] sm:$0xff]
    %v500 = vld [vmem:[#allocation11 + $0x138] sm:$0xff]
    %v501 = vld [vmem:[#allocation11 + $0x140] sm:$0xff]
    %v502 = vld [vmem:[#allocation11 + $0x148] sm:$0xff]
    %v503 = vld [vmem:[#allocation11 + $0x150] sm:$0xff]
    %v504 = vld [vmem:[#allocation11 + $0x158] sm:$0xff]
    %v505 = vld [vmem:[#allocation11 + $0x160] sm:$0xff]
    %v506 = vld [vmem:[#allocation11 + $0x168] sm:$0xff]
    %v507 = vld [vmem:[#allocation11 + $0x170] sm:$0xff]
    %v508 = vld [vmem:[#allocation11 + $0x178] sm:$0xff]
    %v509 = vld [vmem:[#allocation11 + $0x180] sm:$0xff]
    %v510 = vld [vmem:[#allocation11 + $0x188] sm:$0xff]
    %v511 = vld [vmem:[#allocation11 + $0x190] sm:$0xff]
    %v512 = vld [vmem:[#allocation11 + $0x198] sm:$0xff]
    %v513 = vld [vmem:[#allocation11 + $0x1a0] sm:$0xff]
    %v514 = vld [vmem:[#allocation11 + $0x1a8] sm:$0xff]
    %v515 = vld [vmem:[#allocation11 + $0x1b0] sm:$0xff]
    %v516 = vld [vmem:[#allocation11 + $0x1b8] sm:$0xff]
    %v517 = vld [vmem:[#allocation11 + $0x1c0] sm:$0xff]
    %v518 = vld [vmem:[#allocation11 + $0x1c8] sm:$0xff]
    %v519 = vld [vmem:[#allocation11 + $0x1d0] sm:$0xff]
    %v520 = vld [vmem:[#allocation11 + $0x1d8] sm:$0xff]
    %v521 = vld [vmem:[#allocation11 + $0x1e0] sm:$0xff]
    %v522 = vld [vmem:[#allocation11 + $0x1e8] sm:$0xff]
    %v523 = vld [vmem:[#allocation11 + $0x1f0] sm:$0xff]
    %v524 = vld [vmem:[#allocation11 + $0x1f8] sm:$0xff]
    %v525 = vld [vmem:[%s10] sm:$0xf]
    %v527 = vperm.slane %v525, 0
    %v528 = vperm.slane %v525, 1
    %v529 = vperm.slane %v525, 2
    %v530 = vperm.slane %v525, 3
    %v599 = vunpack.c.l.b16 %v461
    %v600 = vunpack.c.h.b16 %v461
    %v601 = vunpack.c.l.b16 %v462
    %v602 = vunpack.c.h.b16 %v462
    %v603 = vunpack.c.l.b16 %v463
    %v604 = vunpack.c.h.b16 %v463
    %v605 = vunpack.c.l.b16 %v464
    %v606 = vunpack.c.h.b16 %v464
    %v607 = vunpack.c.l.b16 %v465
    %v608 = vunpack.c.h.b16 %v465
    %v609 = vunpack.c.l.b16 %v466
    %v610 = vunpack.c.h.b16 %v466
    %v611 = vunpack.c.l.b16 %v467
    %v612 = vunpack.c.h.b16 %v467
    %v613 = vunpack.c.l.b16 %v468
    %v614 = vunpack.c.h.b16 %v468
    %v615 = vunpack.c.l.b16 %v469
    %v616 = vunpack.c.h.b16 %v469
    %v617 = vunpack.c.l.b16 %v470
    %v618 = vunpack.c.h.b16 %v470
    %v619 = vunpack.c.l.b16 %v471
    %v620 = vunpack.c.h.b16 %v471
    %v621 = vunpack.c.l.b16 %v472
    %v622 = vunpack.c.h.b16 %v472
    %v623 = vunpack.c.l.b16 %v473
    %v624 = vunpack.c.h.b16 %v473
    %v625 = vunpack.c.l.b16 %v474
    %v626 = vunpack.c.h.b16 %v474
    %v627 = vunpack.c.l.b16 %v475
    %v628 = vunpack.c.h.b16 %v475
    %v629 = vunpack.c.l.b16 %v476
    %v630 = vunpack.c.h.b16 %v476
    %v631 = vunpack.c.l.b16 %v477
    %v632 = vunpack.c.h.b16 %v477
    %v633 = vunpack.c.l.b16 %v478
    %v634 = vunpack.c.h.b16 %v478
    %v635 = vunpack.c.l.b16 %v479
    %v636 = vunpack.c.h.b16 %v479
    %v637 = vunpack.c.l.b16 %v480
    %v638 = vunpack.c.h.b16 %v480
    %v639 = vunpack.c.l.b16 %v481
    %v640 = vunpack.c.h.b16 %v481
    %v641 = vunpack.c.l.b16 %v482
    %v642 = vunpack.c.h.b16 %v482
    %v643 = vunpack.c.l.b16 %v483
    %v644 = vunpack.c.h.b16 %v483
    %v645 = vunpack.c.l.b16 %v484
    %v646 = vunpack.c.h.b16 %v484
    %v647 = vunpack.c.l.b16 %v485
    %v648 = vunpack.c.h.b16 %v485
    %v649 = vunpack.c.l.b16 %v486
    %v650 = vunpack.c.h.b16 %v486
    %v651 = vunpack.c.l.b16 %v487
    %v652 = vunpack.c.h.b16 %v487
    %v653 = vunpack.c.l.b16 %v488
    %v654 = vunpack.c.h.b16 %v488
    %v655 = vunpack.c.l.b16 %v489
    %v656 = vunpack.c.h.b16 %v489
    %v657 = vunpack.c.l.b16 %v490
    %v658 = vunpack.c.h.b16 %v490
    %v659 = vunpack.c.l.b16 %v491
    %v660 = vunpack.c.h.b16 %v491
    %v661 = vunpack.c.l.b16 %v492
    %v662 = vunpack.c.h.b16 %v492
    %v663 = vunpack.c.l.b16 %v493
    %v664 = vunpack.c.h.b16 %v493
    %v665 = vunpack.c.l.b16 %v494
    %v666 = vunpack.c.h.b16 %v494
    %v667 = vunpack.c.l.b16 %v495
    %v668 = vunpack.c.h.b16 %v495
    %v669 = vunpack.c.l.b16 %v496
    %v670 = vunpack.c.h.b16 %v496
    %v671 = vunpack.c.l.b16 %v497
    %v672 = vunpack.c.h.b16 %v497
    %v673 = vunpack.c.l.b16 %v498
    %v674 = vunpack.c.h.b16 %v498
    %v675 = vunpack.c.l.b16 %v499
    %v676 = vunpack.c.h.b16 %v499
    %v677 = vunpack.c.l.b16 %v500
    %v678 = vunpack.c.h.b16 %v500
    %v679 = vunpack.c.l.b16 %v501
    %v680 = vunpack.c.h.b16 %v501
    %v681 = vunpack.c.l.b16 %v502
    %v682 = vunpack.c.h.b16 %v502
    %v683 = vunpack.c.l.b16 %v503
    %v684 = vunpack.c.h.b16 %v503
    %v685 = vunpack.c.l.b16 %v504
    %v686 = vunpack.c.h.b16 %v504
    %v687 = vunpack.c.l.b16 %v505
    %v688 = vunpack.c.h.b16 %v505
    %v689 = vunpack.c.l.b16 %v506
    %v690 = vunpack.c.h.b16 %v506
    %v691 = vunpack.c.l.b16 %v507
    %v692 = vunpack.c.h.b16 %v507
    %v693 = vunpack.c.l.b16 %v508
    %v694 = vunpack.c.h.b16 %v508
    %v695 = vunpack.c.l.b16 %v509
    %v696 = vunpack.c.h.b16 %v509
    %v697 = vunpack.c.l.b16 %v510
    %v698 = vunpack.c.h.b16 %v510
    %v699 = vunpack.c.l.b16 %v511
    %v700 = vunpack.c.h.b16 %v511
    %v701 = vunpack.c.l.b16 %v512
    %v702 = vunpack.c.h.b16 %v512
    %v703 = vunpack.c.l.b16 %v513
    %v704 = vunpack.c.h.b16 %v513
    %v705 = vunpack.c.l.b16 %v514
    %v706 = vunpack.c.h.b16 %v514
    %v707 = vunpack.c.l.b16 %v515
    %v708 = vunpack.c.h.b16 %v515
    %v709 = vunpack.c.l.b16 %v516
    %v710 = vunpack.c.h.b16 %v516
    %v711 = vunpack.c.l.b16 %v517
    %v712 = vunpack.c.h.b16 %v517
    %v713 = vunpack.c.l.b16 %v518
    %v714 = vunpack.c.h.b16 %v518
    %v715 = vunpack.c.l.b16 %v519
    %v716 = vunpack.c.h.b16 %v519
    %v717 = vunpack.c.l.b16 %v520
    %v718 = vunpack.c.h.b16 %v520
    %v719 = vunpack.c.l.b16 %v521
    %v720 = vunpack.c.h.b16 %v521
    %v721 = vunpack.c.l.b16 %v522
    %v722 = vunpack.c.h.b16 %v522
    %v723 = vunpack.c.l.b16 %v523
    %v724 = vunpack.c.h.b16 %v523
    %v725 = vunpack.c.l.b16 %v524
    %v726 = vunpack.c.h.b16 %v524
    %v727 = vpack.c.b16 %v603, %v599
    %v728 = vpack.c.b16 %v604, %v600
    %v729 = vpack.c.b16 %v605, %v601
    %v730 = vpack.c.b16 %v606, %v602
    %v731 = vpack.c.b16 %v611, %v607
    %v732 = vpack.c.b16 %v612, %v608
    %v733 = vpack.c.b16 %v613, %v609
    %v734 = vpack.c.b16 %v614, %v610
    %v735 = vpack.c.b16 %v619, %v615
    %v736 = vpack.c.b16 %v620, %v616
    %v737 = vpack.c.b16 %v621, %v617
    %v738 = vpack.c.b16 %v622, %v618
    %v739 = vpack.c.b16 %v627, %v623
    %v740 = vpack.c.b16 %v628, %v624
    %v741 = vpack.c.b16 %v629, %v625
    %v742 = vpack.c.b16 %v630, %v626
    %v743 = vpack.c.b16 %v635, %v631
    %v744 = vpack.c.b16 %v636, %v632
    %v745 = vpack.c.b16 %v637, %v633
    %v746 = vpack.c.b16 %v638, %v634
    %v747 = vpack.c.b16 %v643, %v639
    %v748 = vpack.c.b16 %v644, %v640
    %v749 = vpack.c.b16 %v645, %v641
    %v750 = vpack.c.b16 %v646, %v642
    %v751 = vpack.c.b16 %v651, %v647
    %v752 = vpack.c.b16 %v652, %v648
    %v753 = vpack.c.b16 %v653, %v649
    %v754 = vpack.c.b16 %v654, %v650
    %v755 = vpack.c.b16 %v659, %v655
    %v756 = vpack.c.b16 %v660, %v656
    %v757 = vpack.c.b16 %v661, %v657
    %v758 = vpack.c.b16 %v662, %v658
    %v759 = vpack.c.b16 %v667, %v663
    %v760 = vpack.c.b16 %v668, %v664
    %v761 = vpack.c.b16 %v669, %v665
    %v762 = vpack.c.b16 %v670, %v666
    %v763 = vpack.c.b16 %v675, %v671
    %v764 = vpack.c.b16 %v676, %v672
    %v765 = vpack.c.b16 %v677, %v673
    %v766 = vpack.c.b16 %v678, %v674
    %v767 = vpack.c.b16 %v683, %v679
    %v768 = vpack.c.b16 %v684, %v680
    %v769 = vpack.c.b16 %v685, %v681
    %v770 = vpack.c.b16 %v686, %v682
    %v771 = vpack.c.b16 %v691, %v687
    %v772 = vpack.c.b16 %v692, %v688
    %v773 = vpack.c.b16 %v693, %v689
    %v774 = vpack.c.b16 %v694, %v690
    %v775 = vpack.c.b16 %v699, %v695
    %v776 = vpack.c.b16 %v700, %v696
    %v777 = vpack.c.b16 %v701, %v697
    %v778 = vpack.c.b16 %v702, %v698
    %v779 = vpack.c.b16 %v707, %v703
    %v780 = vpack.c.b16 %v708, %v704
    %v781 = vpack.c.b16 %v709, %v705
    %v782 = vpack.c.b16 %v710, %v706
    %v783 = vpack.c.b16 %v715, %v711
    %v784 = vpack.c.b16 %v716, %v712
    %v785 = vpack.c.b16 %v717, %v713
    %v786 = vpack.c.b16 %v718, %v714
    %v787 = vpack.c.b16 %v723, %v719
    %v788 = vpack.c.b16 %v724, %v720
    %v789 = vpack.c.b16 %v725, %v721
    %v790 = vpack.c.b16 %v726, %v722
    %855 = vmatpush.bf16.msra.mxu0 %v755
    %856 = vmatpush.bf16.msra.mxu0 %v751
    %857 = vmatpush.bf16.msra.mxu0 %v747
    %858 = vmatpush.bf16.msra.mxu0 %v743
    %859 = vmatpush.bf16.msra.mxu0 %v739
    %860 = vmatpush.bf16.msra.mxu0 %v735
    %861 = vmatpush.bf16.msra.mxu0 %v731
    %862 = vmatpush.bf16.msra.mxu0 %v727
    %863 = vmatmul.bf16.gmra.mxu0 %v459
    %v864 = vpop.f32.mrf.mxu0
    %v865 = vadd.f32 %v527, %v864
    %v866 = vpop.f32.mrf.mxu0
    %867 = vdwg.mxu0
    %868 = vmatpush.bf16.msra.mxu0 %v787
    %869 = vmatpush.bf16.msra.mxu0 %v783
    %870 = vmatpush.bf16.msra.mxu0 %v779
    %871 = vmatpush.bf16.msra.mxu0 %v775
    %872 = vmatpush.bf16.msra.mxu0 %v771
    %873 = vmatpush.bf16.msra.mxu0 %v767
    %874 = vmatpush.bf16.msra.mxu0 %v763
    %875 = vmatpush.bf16.msra.mxu0 %v759
    %876 = vmatmul.bf16.gmra.mxu0 %v460
    %v877 = vpop.f32.mrf.mxu0
    %v878 = vadd.f32 %v865, %v877
    %v879 = vpop.f32.mrf.mxu0
    %880 = vdwg.mxu0
    %881 = vmatpush.bf16.msra.mxu0 %v756
    %882 = vmatpush.bf16.msra.mxu0 %v752
    %883 = vmatpush.bf16.msra.mxu0 %v748
    %884 = vmatpush.bf16.msra.mxu0 %v744
    %885 = vmatpush.bf16.msra.mxu0 %v740
    %886 = vmatpush.bf16.msra.mxu0 %v736
    %887 = vmatpush.bf16.msra.mxu0 %v732
    %888 = vmatpush.bf16.msra.mxu0 %v728
    %889 = vmatmul.bf16.gmra.mxu0 %v459
    %v890 = vpop.f32.mrf.mxu0
    %v891 = vadd.f32 %v528, %v890
    %v892 = vpop.f32.mrf.mxu0
    %893 = vdwg.mxu0
    %894 = vmatpush.bf16.msra.mxu0 %v788
    %895 = vmatpush.bf16.msra.mxu0 %v784
    %896 = vmatpush.bf16.msra.mxu0 %v780
    %897 = vmatpush.bf16.msra.mxu0 %v776
    %898 = vmatpush.bf16.msra.mxu0 %v772
    %899 = vmatpush.bf16.msra.mxu0 %v768
    %900 = vmatpush.bf16.msra.mxu0 %v764
    %901 = vmatpush.bf16.msra.mxu0 %v760
    %902 = vmatmul.bf16.gmra.mxu0 %v460
    %v903 = vpop.f32.mrf.mxu0
    %v904 = vadd.f32 %v891, %v903
    %v905 = vpop.f32.mrf.mxu0
    %906 = vdwg.mxu0
    %907 = vmatpush.bf16.msra.mxu0 %v757
    %908 = vmatpush.bf16.msra.mxu0 %v753
    %909 = vmatpush.bf16.msra.mxu0 %v749
    %910 = vmatpush.bf16.msra.mxu0 %v745
    %911 = vmatpush.bf16.msra.mxu0 %v741
    %912 = vmatpush.bf16.msra.mxu0 %v737
    %913 = vmatpush.bf16.msra.mxu0 %v733
    %914 = vmatpush.bf16.msra.mxu0 %v729
    %915 = vmatmul.bf16.gmra.mxu0 %v459
    %v916 = vpop.f32.mrf.mxu0
    %v917 = vadd.f32 %v529, %v916
    %v918 = vpop.f32.mrf.mxu0
    %919 = vdwg.mxu0
    %920 = vmatpush.bf16.msra.mxu0 %v789
    %921 = vmatpush.bf16.msra.mxu0 %v785
    %922 = vmatpush.bf16.msra.mxu0 %v781
    %923 = vmatpush.bf16.msra.mxu0 %v777
    %924 = vmatpush.bf16.msra.mxu0 %v773
    %925 = vmatpush.bf16.msra.mxu0 %v769
    %926 = vmatpush.bf16.msra.mxu0 %v765
    %927 = vmatpush.bf16.msra.mxu0 %v761
    %928 = vmatmul.bf16.gmra.mxu0 %v460
    %v929 = vpop.f32.mrf.mxu0
    %v930 = vadd.f32 %v917, %v929
    %v931 = vpop.f32.mrf.mxu0
    %932 = vdwg.mxu0
    %933 = vmatpush.bf16.msra.mxu0 %v758
    %934 = vmatpush.bf16.msra.mxu0 %v754
    %935 = vmatpush.bf16.msra.mxu0 %v750
    %936 = vmatpush.bf16.msra.mxu0 %v746
    %937 = vmatpush.bf16.msra.mxu0 %v742
    %938 = vmatpush.bf16.msra.mxu0 %v738
    %939 = vmatpush.bf16.msra.mxu0 %v734
    %940 = vmatpush.bf16.msra.mxu0 %v730
    %941 = vmatmul.bf16.gmra.mxu0 %v459
    %v942 = vpop.f32.mrf.mxu0
    %v943 = vadd.f32 %v530, %v942
    %v944 = vpop.f32.mrf.mxu0
    %945 = vdwg.mxu0
    %946 = vmatpush.bf16.msra.mxu0 %v790
    %947 = vmatpush.bf16.msra.mxu0 %v786
    %948 = vmatpush.bf16.msra.mxu0 %v782
    %949 = vmatpush.bf16.msra.mxu0 %v778
    %950 = vmatpush.bf16.msra.mxu0 %v774
    %951 = vmatpush.bf16.msra.mxu0 %v770
    %952 = vmatpush.bf16.msra.mxu0 %v766
    %953 = vmatpush.bf16.msra.mxu0 %v762
    %954 = vmatmul.bf16.gmra.mxu0 %v460
    %v955 = vpop.f32.mrf.mxu0
    %v956 = vadd.f32 %v943, %v955
    %v957 = vpop.f32.mrf.mxu0
    %958 = vdwg.mxu0
    %vm959 = vcmp.ge.f32.partialorder %v878, 0.0
    %vm960 = vcmp.ge.f32.partialorder %v904, 0.0
    %vm961 = vcmp.ge.f32.partialorder %v930, 0.0
    %vm962 = vcmp.ge.f32.partialorder %v956, 0.0
    %v963 = vmul.f32 %v878, 0.02
    %v964 = vmul.f32 %v904, 0.02
    %v965 = vmul.f32 %v930, 0.02
    %v966 = vmul.f32 %v956, 0.02
    %v967 = vsel %vm959, %v878, %v963
    %v968 = vsel %vm960, %v904, %v964
    %v969 = vsel %vm961, %v930, %v965
    %v970 = vsel %vm962, %v956, %v966
    %v971 = vld [vmem:[%s11] sm:$0xf]
    %v972 = vld [vmem:[%s12] sm:$0xf]
    %v973 = vadd.f32 %v967, %v968
    %v974 = vadd.f32 %v973, %v969
    %v975 = vadd.f32 %v974, %v970
    %976 = vadd.xlane.f32.xlu0 %v975
    %v977 = vpop.xlane.xlu0 %976
    %v978 = vrcp.pop 512.0
    %v979 = vmul.f32 512.0, %v978
    %v980 = vsub.f32 1.0, %v979
    %v981 = vmul.f32 %v978, %v980
    %v982 = vadd.f32 %v978, %v981
    %vm983 = vweird.f32 %v978
    %v984 = vsel %vm983, %v978, %v982
    %v985 = vmul.f32 %v977, %v984
    %v986 = vsub.f32 %v967, %v985
    %v987 = vsub.f32 %v968, %v985
    %v988 = vsub.f32 %v969, %v985
    %v989 = vsub.f32 %v970, %v985
    %v990 = vmul.f32 %v986, %v986
    %v991 = vmul.f32 %v987, %v987
    %v992 = vmul.f32 %v988, %v988
    %v993 = vmul.f32 %v989, %v989
    %v994 = vadd.f32 %v990, %v991
    %v995 = vadd.f32 %v994, %v992
    %v996 = vadd.f32 %v995, %v993
    %997 = vadd.xlane.f32.xlu0 %v996
    %v998 = vpop.xlane.xlu0 %997
    %v999 = vmul.f32 %v998, %v984
    %v1000 = vadd.f32 %v999, 1e-05
    %v1001 = vrsqrt.pop %v1000
    %v1002 = vmul.f32 %v1001, %v1000
    %v1003 = vmul.f32 %v1002, %v1001
    %v1004 = vmul.f32 0.5, %v1003
    %v1005 = vsub.f32 1.5, %v1004
    %v1006 = vmul.f32 %v1001, %v1005
    %vm1007 = vweird.f32 %v1000
    %vm1008 = vweird.f32 %v1001
    %vm1009 = vmor %vm1007, %vm1008
    %v1010 = vsel %vm1009, %v1001, %v1006
    %v1011 = vmul.f32 %v986, %v1010
    %v1012 = vmul.f32 %v987, %v1010
    %v1013 = vmul.f32 %v988, %v1010
    %v1014 = vmul.f32 %v989, %v1010
    %v1016 = vperm.slane %v971, 0
    %v1017 = vperm.slane %v971, 1
    %v1018 = vperm.slane %v971, 2
    %v1019 = vperm.slane %v971, 3
    %v1024 = vmul.f32 %v1011, %v1016
    %v1025 = vmul.f32 %v1012, %v1017
    %v1026 = vmul.f32 %v1013, %v1018
    %v1027 = vmul.f32 %v1014, %v1019
    %v1029 = vperm.slane %v972, 0
    %v1030 = vperm.slane %v972, 1
    %v1031 = vperm.slane %v972, 2
    %v1032 = vperm.slane %v972, 3
    %v1037 = vadd.f32 %v1024, %v1029
    %v1038 = vadd.f32 %v1025, %v1030
    %v1039 = vadd.f32 %v1026, %v1031
    %v1040 = vadd.f32 %v1027, %v1032
    %v1041 = vpack.c.bf16 %v1037, %v1037
    %v1042 = vpack.c.bf16 %v1038, %v1038
    %v1043 = vpack.c.bf16 %v1039, %v1039
    %v1044 = vpack.c.bf16 %v1040, %v1040
    %v1045 = vld [vmem:[#allocation13] sm:$0xff]
    %v1046 = vld [vmem:[#allocation13 + $0x8] sm:$0xff]
    %v1047 = vld [vmem:[#allocation13 + $0x10] sm:$0xff]
    %v1048 = vld [vmem:[#allocation13 + $0x18] sm:$0xf]
    %v1049 = vld [vmem:[#allocation13 + $0x1c] sm:$0xff]
    %v1050 = vld [vmem:[#allocation13 + $0x24] sm:$0xff]
    %v1051 = vld [vmem:[#allocation13 + $0x2c] sm:$0xff]
    %v1052 = vld [vmem:[#allocation13 + $0x34] sm:$0xf]
    %v1053 = vld [vmem:[#allocation13 + $0x38] sm:$0xff]
    %v1054 = vld [vmem:[#allocation13 + $0x40] sm:$0xff]
    %v1055 = vld [vmem:[#allocation13 + $0x48] sm:$0xff]
    %v1056 = vld [vmem:[#allocation13 + $0x50] sm:$0xf]
    %v1057 = vld [vmem:[#allocation13 + $0x54] sm:$0xff]
    %v1058 = vld [vmem:[#allocation13 + $0x5c] sm:$0xff]
    %v1059 = vld [vmem:[#allocation13 + $0x64] sm:$0xff]
    %v1060 = vld [vmem:[#allocation13 + $0x6c] sm:$0xf]
    %v1061 = vld [vmem:[#allocation13 + $0x70] sm:$0xff]
    %v1062 = vld [vmem:[#allocation13 + $0x78] sm:$0xff]
    %v1063 = vld [vmem:[#allocation13 + $0x80] sm:$0xff]
    %v1064 = vld [vmem:[#allocation13 + $0x88] sm:$0xf]
    %v1065 = vld [vmem:[#allocation13 + $0x8c] sm:$0xff]
    %v1066 = vld [vmem:[#allocation13 + $0x94] sm:$0xff]
    %v1067 = vld [vmem:[#allocation13 + $0x9c] sm:$0xff]
    %v1068 = vld [vmem:[#allocation13 + $0xa4] sm:$0xf]
    %v1069 = vld [vmem:[#allocation13 + $0xa8] sm:$0xff]
    %v1070 = vld [vmem:[#allocation13 + $0xb0] sm:$0xff]
    %v1071 = vld [vmem:[#allocation13 + $0xb8] sm:$0xff]
    %v1072 = vld [vmem:[#allocation13 + $0xc0] sm:$0xf]
    %v1073 = vld [vmem:[#allocation13 + $0xc4] sm:$0xff]
    %v1074 = vld [vmem:[#allocation13 + $0xcc] sm:$0xff]
    %v1075 = vld [vmem:[#allocation13 + $0xd4] sm:$0xff]
    %v1076 = vld [vmem:[#allocation13 + $0xdc] sm:$0xf]
    %v1077 = vld [vmem:[#allocation13 + $0xe0] sm:$0xff]
    %v1078 = vld [vmem:[#allocation13 + $0xe8] sm:$0xff]
    %v1079 = vld [vmem:[#allocation13 + $0xf0] sm:$0xff]
    %v1080 = vld [vmem:[#allocation13 + $0xf8] sm:$0xf]
    %v1081 = vld [vmem:[#allocation13 + $0xfc] sm:$0xff]
    %v1082 = vld [vmem:[#allocation13 + $0x104] sm:$0xff]
    %v1083 = vld [vmem:[#allocation13 + $0x10c] sm:$0xff]
    %v1084 = vld [vmem:[#allocation13 + $0x114] sm:$0xf]
    %v1085 = vld [vmem:[#allocation13 + $0x118] sm:$0xff]
    %v1086 = vld [vmem:[#allocation13 + $0x120] sm:$0xff]
    %v1087 = vld [vmem:[#allocation13 + $0x128] sm:$0xff]
    %v1088 = vld [vmem:[#allocation13 + $0x130] sm:$0xf]
    %v1089 = vld [vmem:[#allocation13 + $0x134] sm:$0xff]
    %v1090 = vld [vmem:[#allocation13 + $0x13c] sm:$0xff]
    %v1091 = vld [vmem:[#allocation13 + $0x144] sm:$0xff]
    %v1092 = vld [vmem:[#allocation13 + $0x14c] sm:$0xf]
    %v1093 = vld [vmem:[#allocation13 + $0x150] sm:$0xff]
    %v1094 = vld [vmem:[#allocation13 + $0x158] sm:$0xff]
    %v1095 = vld [vmem:[#allocation13 + $0x160] sm:$0xff]
    %v1096 = vld [vmem:[#allocation13 + $0x168] sm:$0xf]
    %v1097 = vld [vmem:[#allocation13 + $0x16c] sm:$0xff]
    %v1098 = vld [vmem:[#allocation13 + $0x174] sm:$0xff]
    %v1099 = vld [vmem:[#allocation13 + $0x17c] sm:$0xff]
    %v1100 = vld [vmem:[#allocation13 + $0x184] sm:$0xf]
    %v1101 = vld [vmem:[#allocation13 + $0x188] sm:$0xff]
    %v1102 = vld [vmem:[#allocation13 + $0x190] sm:$0xff]
    %v1103 = vld [vmem:[#allocation13 + $0x198] sm:$0xff]
    %v1104 = vld [vmem:[#allocation13 + $0x1a0] sm:$0xf]
    %v1105 = vld [vmem:[#allocation13 + $0x1a4] sm:$0xff]
    %v1106 = vld [vmem:[#allocation13 + $0x1ac] sm:$0xff]
    %v1107 = vld [vmem:[#allocation13 + $0x1b4] sm:$0xff]
    %v1108 = vld [vmem:[#allocation13 + $0x1bc] sm:$0xf]
    %v1109 = vld [vmem:[#allocation13 + $0x1c0] sm:$0xff]
    %v1110 = vld [vmem:[#allocation13 + $0x1c8] sm:$0xff]
    %v1111 = vld [vmem:[#allocation13 + $0x1d0] sm:$0xff]
    %v1112 = vld [vmem:[#allocation13 + $0x1d8] sm:$0xf]
    %v1113 = vld [vmem:[#allocation13 + $0x1dc] sm:$0xff]
    %v1114 = vld [vmem:[#allocation13 + $0x1e4] sm:$0xff]
    %v1115 = vld [vmem:[#allocation13 + $0x1ec] sm:$0xff]
    %v1116 = vld [vmem:[#allocation13 + $0x1f4] sm:$0xf]
    %v1117 = vld [vmem:[#allocation13 + $0x1f8] sm:$0xff]
    %v1118 = vld [vmem:[#allocation13 + $0x200] sm:$0xff]
    %v1119 = vld [vmem:[#allocation13 + $0x208] sm:$0xff]
    %v1120 = vld [vmem:[#allocation13 + $0x210] sm:$0xf]
    %v1121 = vld [vmem:[#allocation13 + $0x214] sm:$0xff]
    %v1122 = vld [vmem:[#allocation13 + $0x21c] sm:$0xff]
    %v1123 = vld [vmem:[#allocation13 + $0x224] sm:$0xff]
    %v1124 = vld [vmem:[#allocation13 + $0x22c] sm:$0xf]
    %v1125 = vld [vmem:[#allocation13 + $0x230] sm:$0xff]
    %v1126 = vld [vmem:[#allocation13 + $0x238] sm:$0xff]
    %v1127 = vld [vmem:[#allocation13 + $0x240] sm:$0xff]
    %v1128 = vld [vmem:[#allocation13 + $0x248] sm:$0xf]
    %v1129 = vld [vmem:[#allocation13 + $0x24c] sm:$0xff]
    %v1130 = vld [vmem:[#allocation13 + $0x254] sm:$0xff]
    %v1131 = vld [vmem:[#allocation13 + $0x25c] sm:$0xff]
    %v1132 = vld [vmem:[#allocation13 + $0x264] sm:$0xf]
    %v1133 = vld [vmem:[#allocation13 + $0x268] sm:$0xff]
    %v1134 = vld [vmem:[#allocation13 + $0x270] sm:$0xff]
    %v1135 = vld [vmem:[#allocation13 + $0x278] sm:$0xff]
    %v1136 = vld [vmem:[#allocation13 + $0x280] sm:$0xf]
    %v1137 = vld [vmem:[#allocation13 + $0x284] sm:$0xff]
    %v1138 = vld [vmem:[#allocation13 + $0x28c] sm:$0xff]
    %v1139 = vld [vmem:[#allocation13 + $0x294] sm:$0xff]
    %v1140 = vld [vmem:[#allocation13 + $0x29c] sm:$0xf]
    %v1141 = vld [vmem:[#allocation13 + $0x2a0] sm:$0xff]
    %v1142 = vld [vmem:[#allocation13 + $0x2a8] sm:$0xff]
    %v1143 = vld [vmem:[#allocation13 + $0x2b0] sm:$0xff]
    %v1144 = vld [vmem:[#allocation13 + $0x2b8] sm:$0xf]
    %v1145 = vld [vmem:[#allocation13 + $0x2bc] sm:$0xff]
    %v1146 = vld [vmem:[#allocation13 + $0x2c4] sm:$0xff]
    %v1147 = vld [vmem:[#allocation13 + $0x2cc] sm:$0xff]
    %v1148 = vld [vmem:[#allocation13 + $0x2d4] sm:$0xf]
    %v1149 = vld [vmem:[#allocation13 + $0x2d8] sm:$0xff]
    %v1150 = vld [vmem:[#allocation13 + $0x2e0] sm:$0xff]
    %v1151 = vld [vmem:[#allocation13 + $0x2e8] sm:$0xff]
    %v1152 = vld [vmem:[#allocation13 + $0x2f0] sm:$0xf]
    %v1153 = vld [vmem:[#allocation13 + $0x2f4] sm:$0xff]
    %v1154 = vld [vmem:[#allocation13 + $0x2fc] sm:$0xff]
    %v1155 = vld [vmem:[#allocation13 + $0x304] sm:$0xff]
    %v1156 = vld [vmem:[#allocation13 + $0x30c] sm:$0xf]
    %v1157 = vld [vmem:[#allocation13 + $0x310] sm:$0xff]
    %v1158 = vld [vmem:[#allocation13 + $0x318] sm:$0xff]
    %v1159 = vld [vmem:[#allocation13 + $0x320] sm:$0xff]
    %v1160 = vld [vmem:[#allocation13 + $0x328] sm:$0xf]
    %v1161 = vld [vmem:[#allocation13 + $0x32c] sm:$0xff]
    %v1162 = vld [vmem:[#allocation13 + $0x334] sm:$0xff]
    %v1163 = vld [vmem:[#allocation13 + $0x33c] sm:$0xff]
    %v1164 = vld [vmem:[#allocation13 + $0x344] sm:$0xf]
    %v1165 = vld [vmem:[#allocation13 + $0x348] sm:$0xff]
    %v1166 = vld [vmem:[#allocation13 + $0x350] sm:$0xff]
    %v1167 = vld [vmem:[#allocation13 + $0x358] sm:$0xff]
    %v1168 = vld [vmem:[#allocation13 + $0x360] sm:$0xf]
    %v1169 = vld [vmem:[#allocation13 + $0x364] sm:$0xff]
    %v1170 = vld [vmem:[#allocation13 + $0x36c] sm:$0xff]
    %v1171 = vld [vmem:[#allocation13 + $0x374] sm:$0xff]
    %v1172 = vld [vmem:[#allocation13 + $0x37c] sm:$0xf]
    %v1173 = vld [vmem:[#allocation13 + $0x380] sm:$0xff]
    %v1174 = vld [vmem:[#allocation13 + $0x388] sm:$0xff]
    %v1175 = vld [vmem:[#allocation13 + $0x390] sm:$0xff]
    %v1176 = vld [vmem:[#allocation13 + $0x398] sm:$0xf]
    %v1177 = vld [vmem:[#allocation13 + $0x39c] sm:$0xff]
    %v1178 = vld [vmem:[#allocation13 + $0x3a4] sm:$0xff]
    %v1179 = vld [vmem:[#allocation13 + $0x3ac] sm:$0xff]
    %v1180 = vld [vmem:[#allocation13 + $0x3b4] sm:$0xf]
    %v1181 = vld [vmem:[#allocation13 + $0x3b8] sm:$0xff]
    %v1182 = vld [vmem:[#allocation13 + $0x3c0] sm:$0xff]
    %v1183 = vld [vmem:[#allocation13 + $0x3c8] sm:$0xff]
    %v1184 = vld [vmem:[#allocation13 + $0x3d0] sm:$0xf]
    %v1185 = vld [vmem:[#allocation13 + $0x3d4] sm:$0xff]
    %v1186 = vld [vmem:[#allocation13 + $0x3dc] sm:$0xff]
    %v1187 = vld [vmem:[#allocation13 + $0x3e4] sm:$0xff]
    %v1188 = vld [vmem:[#allocation13 + $0x3ec] sm:$0xf]
    %v1189 = vld [vmem:[#allocation13 + $0x3f0] sm:$0xff]
    %v1190 = vld [vmem:[#allocation13 + $0x3f8] sm:$0xff]
    %v1191 = vld [vmem:[#allocation13 + $0x400] sm:$0xff]
    %v1192 = vld [vmem:[#allocation13 + $0x408] sm:$0xf]
    %v1193 = vld [vmem:[#allocation13 + $0x40c] sm:$0xff]
    %v1194 = vld [vmem:[#allocation13 + $0x414] sm:$0xff]
    %v1195 = vld [vmem:[#allocation13 + $0x41c] sm:$0xff]
    %v1196 = vld [vmem:[#allocation13 + $0x424] sm:$0xf]
    %v1197 = vld [vmem:[#allocation13 + $0x428] sm:$0xff]
    %v1198 = vld [vmem:[#allocation13 + $0x430] sm:$0xff]
    %v1199 = vld [vmem:[#allocation13 + $0x438] sm:$0xff]
    %v1200 = vld [vmem:[#allocation13 + $0x440] sm:$0xf]
    %v1201 = vld [vmem:[#allocation13 + $0x444] sm:$0xff]
    %v1202 = vld [vmem:[#allocation13 + $0x44c] sm:$0xff]
    %v1203 = vld [vmem:[#allocation13 + $0x454] sm:$0xff]
    %v1204 = vld [vmem:[#allocation13 + $0x45c] sm:$0xf]
    %v1205 = vld [vmem:[#allocation13 + $0x460] sm:$0xff]
    %v1206 = vld [vmem:[#allocation13 + $0x468] sm:$0xff]
    %v1207 = vld [vmem:[#allocation13 + $0x470] sm:$0xff]
    %v1208 = vld [vmem:[#allocation13 + $0x478] sm:$0xf]
    %v1209 = vld [vmem:[#allocation13 + $0x47c] sm:$0xff]
    %v1210 = vld [vmem:[#allocation13 + $0x484] sm:$0xff]
    %v1211 = vld [vmem:[#allocation13 + $0x48c] sm:$0xff]
    %v1212 = vld [vmem:[#allocation13 + $0x494] sm:$0xf]
    %v1213 = vld [vmem:[#allocation13 + $0x498] sm:$0xff]
    %v1214 = vld [vmem:[#allocation13 + $0x4a0] sm:$0xff]
    %v1215 = vld [vmem:[#allocation13 + $0x4a8] sm:$0xff]
    %v1216 = vld [vmem:[#allocation13 + $0x4b0] sm:$0xf]
    %v1217 = vld [vmem:[#allocation13 + $0x4b4] sm:$0xff]
    %v1218 = vld [vmem:[#allocation13 + $0x4bc] sm:$0xff]
    %v1219 = vld [vmem:[#allocation13 + $0x4c4] sm:$0xff]
    %v1220 = vld [vmem:[#allocation13 + $0x4cc] sm:$0xf]
    %v1221 = vld [vmem:[#allocation13 + $0x4d0] sm:$0xff]
    %v1222 = vld [vmem:[#allocation13 + $0x4d8] sm:$0xff]
    %v1223 = vld [vmem:[#allocation13 + $0x4e0] sm:$0xff]
    %v1224 = vld [vmem:[#allocation13 + $0x4e8] sm:$0xf]
    %v1225 = vld [vmem:[#allocation13 + $0x4ec] sm:$0xff]
    %v1226 = vld [vmem:[#allocation13 + $0x4f4] sm:$0xff]
    %v1227 = vld [vmem:[#allocation13 + $0x4fc] sm:$0xff]
    %v1228 = vld [vmem:[#allocation13 + $0x504] sm:$0xf]
    %v1229 = vld [vmem:[#allocation13 + $0x508] sm:$0xff]
    %v1230 = vld [vmem:[#allocation13 + $0x510] sm:$0xff]
    %v1231 = vld [vmem:[#allocation13 + $0x518] sm:$0xff]
    %v1232 = vld [vmem:[#allocation13 + $0x520] sm:$0xf]
    %v1233 = vld [vmem:[#allocation13 + $0x524] sm:$0xff]
    %v1234 = vld [vmem:[#allocation13 + $0x52c] sm:$0xff]
    %v1235 = vld [vmem:[#allocation13 + $0x534] sm:$0xff]
    %v1236 = vld [vmem:[#allocation13 + $0x53c] sm:$0xf]
    %v1237 = vld [vmem:[#allocation13 + $0x540] sm:$0xff]
    %v1238 = vld [vmem:[#allocation13 + $0x548] sm:$0xff]
    %v1239 = vld [vmem:[#allocation13 + $0x550] sm:$0xff]
    %v1240 = vld [vmem:[#allocation13 + $0x558] sm:$0xf]
    %v1241 = vld [vmem:[#allocation13 + $0x55c] sm:$0xff]
    %v1242 = vld [vmem:[#allocation13 + $0x564] sm:$0xff]
    %v1243 = vld [vmem:[#allocation13 + $0x56c] sm:$0xff]
    %v1244 = vld [vmem:[#allocation13 + $0x574] sm:$0xf]
    %v1245 = vld [vmem:[#allocation13 + $0x578] sm:$0xff]
    %v1246 = vld [vmem:[#allocation13 + $0x580] sm:$0xff]
    %v1247 = vld [vmem:[#allocation13 + $0x588] sm:$0xff]
    %v1248 = vld [vmem:[#allocation13 + $0x590] sm:$0xf]
    %v1249 = vld [vmem:[#allocation13 + $0x594] sm:$0xff]
    %v1250 = vld [vmem:[#allocation13 + $0x59c] sm:$0xff]
    %v1251 = vld [vmem:[#allocation13 + $0x5a4] sm:$0xff]
    %v1252 = vld [vmem:[#allocation13 + $0x5ac] sm:$0xf]
    %v1253 = vld [vmem:[#allocation13 + $0x5b0] sm:$0xff]
    %v1254 = vld [vmem:[#allocation13 + $0x5b8] sm:$0xff]
    %v1255 = vld [vmem:[#allocation13 + $0x5c0] sm:$0xff]
    %v1256 = vld [vmem:[#allocation13 + $0x5c8] sm:$0xf]
    %v1257 = vld [vmem:[#allocation13 + $0x5cc] sm:$0xff]
    %v1258 = vld [vmem:[#allocation13 + $0x5d4] sm:$0xff]
    %v1259 = vld [vmem:[#allocation13 + $0x5dc] sm:$0xff]
    %v1260 = vld [vmem:[#allocation13 + $0x5e4] sm:$0xf]
    %v1261 = vld [vmem:[#allocation13 + $0x5e8] sm:$0xff]
    %v1262 = vld [vmem:[#allocation13 + $0x5f0] sm:$0xff]
    %v1263 = vld [vmem:[#allocation13 + $0x5f8] sm:$0xff]
    %v1264 = vld [vmem:[#allocation13 + $0x600] sm:$0xf]
    %v1265 = vld [vmem:[#allocation13 + $0x604] sm:$0xff]
    %v1266 = vld [vmem:[#allocation13 + $0x60c] sm:$0xff]
    %v1267 = vld [vmem:[#allocation13 + $0x614] sm:$0xff]
    %v1268 = vld [vmem:[#allocation13 + $0x61c] sm:$0xf]
    %v1269 = vld [vmem:[#allocation13 + $0x620] sm:$0xff]
    %v1270 = vld [vmem:[#allocation13 + $0x628] sm:$0xff]
    %v1271 = vld [vmem:[#allocation13 + $0x630] sm:$0xff]
    %v1272 = vld [vmem:[#allocation13 + $0x638] sm:$0xf]
    %v1273 = vld [vmem:[#allocation13 + $0x63c] sm:$0xff]
    %v1274 = vld [vmem:[#allocation13 + $0x644] sm:$0xff]
    %v1275 = vld [vmem:[#allocation13 + $0x64c] sm:$0xff]
    %v1276 = vld [vmem:[#allocation13 + $0x654] sm:$0xf]
    %v1277 = vld [vmem:[#allocation13 + $0x658] sm:$0xff]
    %v1278 = vld [vmem:[#allocation13 + $0x660] sm:$0xff]
    %v1279 = vld [vmem:[#allocation13 + $0x668] sm:$0xff]
    %v1280 = vld [vmem:[#allocation13 + $0x670] sm:$0xf]
    %v1281 = vld [vmem:[#allocation13 + $0x674] sm:$0xff]
    %v1282 = vld [vmem:[#allocation13 + $0x67c] sm:$0xff]
    %v1283 = vld [vmem:[#allocation13 + $0x684] sm:$0xff]
    %v1284 = vld [vmem:[#allocation13 + $0x68c] sm:$0xf]
    %v1285 = vld [vmem:[#allocation13 + $0x690] sm:$0xff]
    %v1286 = vld [vmem:[#allocation13 + $0x698] sm:$0xff]
    %v1287 = vld [vmem:[#allocation13 + $0x6a0] sm:$0xff]
    %v1288 = vld [vmem:[#allocation13 + $0x6a8] sm:$0xf]
    %v1289 = vld [vmem:[#allocation13 + $0x6ac] sm:$0xff]
    %v1290 = vld [vmem:[#allocation13 + $0x6b4] sm:$0xff]
    %v1291 = vld [vmem:[#allocation13 + $0x6bc] sm:$0xff]
    %v1292 = vld [vmem:[#allocation13 + $0x6c4] sm:$0xf]
    %v1293 = vld [vmem:[#allocation13 + $0x6c8] sm:$0xff]
    %v1294 = vld [vmem:[#allocation13 + $0x6d0] sm:$0xff]
    %v1295 = vld [vmem:[#allocation13 + $0x6d8] sm:$0xff]
    %v1296 = vld [vmem:[#allocation13 + $0x6e0] sm:$0xf]
    %v1297 = vld [vmem:[#allocation13 + $0x6e4] sm:$0xff]
    %v1298 = vld [vmem:[#allocation13 + $0x6ec] sm:$0xff]
    %v1299 = vld [vmem:[#allocation13 + $0x6f4] sm:$0xff]
    %v1300 = vld [vmem:[#allocation13 + $0x6fc] sm:$0xf]
    %v1301 = vld [vmem:[%s14] sm:$0xff]
    %v1303 = vperm.slane %v1301, 0
    %v1304 = vperm.slane %v1301, 1
    %v1305 = vperm.slane %v1301, 2
    %v1306 = vperm.slane %v1301, 3
    %v1307 = vperm.slane %v1301, 4
    %v1308 = vperm.slane %v1301, 5
    %v1309 = vperm.slane %v1301, 6
    %v1573 = vunpack.c.l.b16 %v1045
    %v1574 = vunpack.c.h.b16 %v1045
    %v1575 = vunpack.c.l.b16 %v1046
    %v1576 = vunpack.c.h.b16 %v1046
    %v1577 = vunpack.c.l.b16 %v1047
    %v1578 = vunpack.c.h.b16 %v1047
    %v1579 = vunpack.c.l.b16 %v1048
    %v1580 = vunpack.c.l.b16 %v1049
    %v1581 = vunpack.c.h.b16 %v1049
    %v1582 = vunpack.c.l.b16 %v1050
    %v1583 = vunpack.c.h.b16 %v1050
    %v1584 = vunpack.c.l.b16 %v1051
    %v1585 = vunpack.c.h.b16 %v1051
    %v1586 = vunpack.c.l.b16 %v1052
    %v1587 = vunpack.c.l.b16 %v1053
    %v1588 = vunpack.c.h.b16 %v1053
    %v1589 = vunpack.c.l.b16 %v1054
    %v1590 = vunpack.c.h.b16 %v1054
    %v1591 = vunpack.c.l.b16 %v1055
    %v1592 = vunpack.c.h.b16 %v1055
    %v1593 = vunpack.c.l.b16 %v1056
    %v1594 = vunpack.c.l.b16 %v1057
    %v1595 = vunpack.c.h.b16 %v1057
    %v1596 = vunpack.c.l.b16 %v1058
    %v1597 = vunpack.c.h.b16 %v1058
    %v1598 = vunpack.c.l.b16 %v1059
    %v1599 = vunpack.c.h.b16 %v1059
    %v1600 = vunpack.c.l.b16 %v1060
    %v1601 = vunpack.c.l.b16 %v1061
    %v1602 = vunpack.c.h.b16 %v1061
    %v1603 = vunpack.c.l.b16 %v1062
    %v1604 = vunpack.c.h.b16 %v1062
    %v1605 = vunpack.c.l.b16 %v1063
    %v1606 = vunpack.c.h.b16 %v1063
    %v1607 = vunpack.c.l.b16 %v1064
    %v1608 = vunpack.c.l.b16 %v1065
    %v1609 = vunpack.c.h.b16 %v1065
    %v1610 = vunpack.c.l.b16 %v1066
    %v1611 = vunpack.c.h.b16 %v1066
    %v1612 = vunpack.c.l.b16 %v1067
    %v1613 = vunpack.c.h.b16 %v1067
    %v1614 = vunpack.c.l.b16 %v1068
    %v1615 = vunpack.c.l.b16 %v1069
    %v1616 = vunpack.c.h.b16 %v1069
    %v1617 = vunpack.c.l.b16 %v1070
    %v1618 = vunpack.c.h.b16 %v1070
    %v1619 = vunpack.c.l.b16 %v1071
    %v1620 = vunpack.c.h.b16 %v1071
    %v1621 = vunpack.c.l.b16 %v1072
    %v1622 = vunpack.c.l.b16 %v1073
    %v1623 = vunpack.c.h.b16 %v1073
    %v1624 = vunpack.c.l.b16 %v1074
    %v1625 = vunpack.c.h.b16 %v1074
    %v1626 = vunpack.c.l.b16 %v1075
    %v1627 = vunpack.c.h.b16 %v1075
    %v1628 = vunpack.c.l.b16 %v1076
    %v1629 = vunpack.c.l.b16 %v1077
    %v1630 = vunpack.c.h.b16 %v1077
    %v1631 = vunpack.c.l.b16 %v1078
    %v1632 = vunpack.c.h.b16 %v1078
    %v1633 = vunpack.c.l.b16 %v1079
    %v1634 = vunpack.c.h.b16 %v1079
    %v1635 = vunpack.c.l.b16 %v1080
    %v1636 = vunpack.c.l.b16 %v1081
    %v1637 = vunpack.c.h.b16 %v1081
    %v1638 = vunpack.c.l.b16 %v1082
    %v1639 = vunpack.c.h.b16 %v1082
    %v1640 = vunpack.c.l.b16 %v1083
    %v1641 = vunpack.c.h.b16 %v1083
    %v1642 = vunpack.c.l.b16 %v1084
    %v1643 = vunpack.c.l.b16 %v1085
    %v1644 = vunpack.c.h.b16 %v1085
    %v1645 = vunpack.c.l.b16 %v1086
    %v1646 = vunpack.c.h.b16 %v1086
    %v1647 = vunpack.c.l.b16 %v1087
    %v1648 = vunpack.c.h.b16 %v1087
    %v1649 = vunpack.c.l.b16 %v1088
    %v1650 = vunpack.c.l.b16 %v1089
    %v1651 = vunpack.c.h.b16 %v1089
    %v1652 = vunpack.c.l.b16 %v1090
    %v1653 = vunpack.c.h.b16 %v1090
    %v1654 = vunpack.c.l.b16 %v1091
    %v1655 = vunpack.c.h.b16 %v1091
    %v1656 = vunpack.c.l.b16 %v1092
    %v1657 = vunpack.c.l.b16 %v1093
    %v1658 = vunpack.c.h.b16 %v1093
    %v1659 = vunpack.c.l.b16 %v1094
    %v1660 = vunpack.c.h.b16 %v1094
    %v1661 = vunpack.c.l.b16 %v1095
    %v1662 = vunpack.c.h.b16 %v1095
    %v1663 = vunpack.c.l.b16 %v1096
    %v1664 = vunpack.c.l.b16 %v1097
    %v1665 = vunpack.c.h.b16 %v1097
    %v1666 = vunpack.c.l.b16 %v1098
    %v1667 = vunpack.c.h.b16 %v1098
    %v1668 = vunpack.c.l.b16 %v1099
    %v1669 = vunpack.c.h.b16 %v1099
    %v1670 = vunpack.c.l.b16 %v1100
    %v1671 = vunpack.c.l.b16 %v1101
    %v1672 = vunpack.c.h.b16 %v1101
    %v1673 = vunpack.c.l.b16 %v1102
    %v1674 = vunpack.c.h.b16 %v1102
    %v1675 = vunpack.c.l.b16 %v1103
    %v1676 = vunpack.c.h.b16 %v1103
    %v1677 = vunpack.c.l.b16 %v1104
    %v1678 = vunpack.c.l.b16 %v1105
    %v1679 = vunpack.c.h.b16 %v1105
    %v1680 = vunpack.c.l.b16 %v1106
    %v1681 = vunpack.c.h.b16 %v1106
    %v1682 = vunpack.c.l.b16 %v1107
    %v1683 = vunpack.c.h.b16 %v1107
    %v1684 = vunpack.c.l.b16 %v1108
    %v1685 = vunpack.c.l.b16 %v1109
    %v1686 = vunpack.c.h.b16 %v1109
    %v1687 = vunpack.c.l.b16 %v1110
    %v1688 = vunpack.c.h.b16 %v1110
    %v1689 = vunpack.c.l.b16 %v1111
    %v1690 = vunpack.c.h.b16 %v1111
    %v1691 = vunpack.c.l.b16 %v1112
    %v1692 = vunpack.c.l.b16 %v1113
    %v1693 = vunpack.c.h.b16 %v1113
    %v1694 = vunpack.c.l.b16 %v1114
    %v1695 = vunpack.c.h.b16 %v1114
    %v1696 = vunpack.c.l.b16 %v1115
    %v1697 = vunpack.c.h.b16 %v1115
    %v1698 = vunpack.c.l.b16 %v1116
    %v1699 = vunpack.c.l.b16 %v1117
    %v1700 = vunpack.c.h.b16 %v1117
    %v1701 = vunpack.c.l.b16 %v1118
    %v1702 = vunpack.c.h.b16 %v1118
    %v1703 = vunpack.c.l.b16 %v1119
    %v1704 = vunpack.c.h.b16 %v1119
    %v1705 = vunpack.c.l.b16 %v1120
    %v1706 = vunpack.c.l.b16 %v1121
    %v1707 = vunpack.c.h.b16 %v1121
    %v1708 = vunpack.c.l.b16 %v1122
    %v1709 = vunpack.c.h.b16 %v1122
    %v1710 = vunpack.c.l.b16 %v1123
    %v1711 = vunpack.c.h.b16 %v1123
    %v1712 = vunpack.c.l.b16 %v1124
    %v1713 = vunpack.c.l.b16 %v1125
    %v1714 = vunpack.c.h.b16 %v1125
    %v1715 = vunpack.c.l.b16 %v1126
    %v1716 = vunpack.c.h.b16 %v1126
    %v1717 = vunpack.c.l.b16 %v1127
    %v1718 = vunpack.c.h.b16 %v1127
    %v1719 = vunpack.c.l.b16 %v1128
    %v1720 = vunpack.c.l.b16 %v1129
    %v1721 = vunpack.c.h.b16 %v1129
    %v1722 = vunpack.c.l.b16 %v1130
    %v1723 = vunpack.c.h.b16 %v1130
    %v1724 = vunpack.c.l.b16 %v1131
    %v1725 = vunpack.c.h.b16 %v1131
    %v1726 = vunpack.c.l.b16 %v1132
    %v1727 = vunpack.c.l.b16 %v1133
    %v1728 = vunpack.c.h.b16 %v1133
    %v1729 = vunpack.c.l.b16 %v1134
    %v1730 = vunpack.c.h.b16 %v1134
    %v1731 = vunpack.c.l.b16 %v1135
    %v1732 = vunpack.c.h.b16 %v1135
    %v1733 = vunpack.c.l.b16 %v1136
    %v1734 = vunpack.c.l.b16 %v1137
    %v1735 = vunpack.c.h.b16 %v1137
    %v1736 = vunpack.c.l.b16 %v1138
    %v1737 = vunpack.c.h.b16 %v1138
    %v1738 = vunpack.c.l.b16 %v1139
    %v1739 = vunpack.c.h.b16 %v1139
    %v1740 = vunpack.c.l.b16 %v1140
    %v1741 = vunpack.c.l.b16 %v1141
    %v1742 = vunpack.c.h.b16 %v1141
    %v1743 = vunpack.c.l.b16 %v1142
    %v1744 = vunpack.c.h.b16 %v1142
    %v1745 = vunpack.c.l.b16 %v1143
    %v1746 = vunpack.c.h.b16 %v1143
    %v1747 = vunpack.c.l.b16 %v1144
    %v1748 = vunpack.c.l.b16 %v1145
    %v1749 = vunpack.c.h.b16 %v1145
    %v1750 = vunpack.c.l.b16 %v1146
    %v1751 = vunpack.c.h.b16 %v1146
    %v1752 = vunpack.c.l.b16 %v1147
    %v1753 = vunpack.c.h.b16 %v1147
    %v1754 = vunpack.c.l.b16 %v1148
    %v1755 = vunpack.c.l.b16 %v1149
    %v1756 = vunpack.c.h.b16 %v1149
    %v1757 = vunpack.c.l.b16 %v1150
    %v1758 = vunpack.c.h.b16 %v1150
    %v1759 = vunpack.c.l.b16 %v1151
    %v1760 = vunpack.c.h.b16 %v1151
    %v1761 = vunpack.c.l.b16 %v1152
    %v1762 = vunpack.c.l.b16 %v1153
    %v1763 = vunpack.c.h.b16 %v1153
    %v1764 = vunpack.c.l.b16 %v1154
    %v1765 = vunpack.c.h.b16 %v1154
    %v1766 = vunpack.c.l.b16 %v1155
    %v1767 = vunpack.c.h.b16 %v1155
    %v1768 = vunpack.c.l.b16 %v1156
    %v1769 = vunpack.c.l.b16 %v1157
    %v1770 = vunpack.c.h.b16 %v1157
    %v1771 = vunpack.c.l.b16 %v1158
    %v1772 = vunpack.c.h.b16 %v1158
    %v1773 = vunpack.c.l.b16 %v1159
    %v1774 = vunpack.c.h.b16 %v1159
    %v1775 = vunpack.c.l.b16 %v1160
    %v1776 = vunpack.c.l.b16 %v1161
    %v1777 = vunpack.c.h.b16 %v1161
    %v1778 = vunpack.c.l.b16 %v1162
    %v1779 = vunpack.c.h.b16 %v1162
    %v1780 = vunpack.c.l.b16 %v1163
    %v1781 = vunpack.c.h.b16 %v1163
    %v1782 = vunpack.c.l.b16 %v1164
    %v1783 = vunpack.c.l.b16 %v1165
    %v1784 = vunpack.c.h.b16 %v1165
    %v1785 = vunpack.c.l.b16 %v1166
    %v1786 = vunpack.c.h.b16 %v1166
    %v1787 = vunpack.c.l.b16 %v1167
    %v1788 = vunpack.c.h.b16 %v1167
    %v1789 = vunpack.c.l.b16 %v1168
    %v1790 = vunpack.c.l.b16 %v1169
    %v1791 = vunpack.c.h.b16 %v1169
    %v1792 = vunpack.c.l.b16 %v1170
    %v1793 = vunpack.c.h.b16 %v1170
    %v1794 = vunpack.c.l.b16 %v1171
    %v1795 = vunpack.c.h.b16 %v1171
    %v1796 = vunpack.c.l.b16 %v1172
    %v1797 = vunpack.c.l.b16 %v1173
    %v1798 = vunpack.c.h.b16 %v1173
    %v1799 = vunpack.c.l.b16 %v1174
    %v1800 = vunpack.c.h.b16 %v1174
    %v1801 = vunpack.c.l.b16 %v1175
    %v1802 = vunpack.c.h.b16 %v1175
    %v1803 = vunpack.c.l.b16 %v1176
    %v1804 = vunpack.c.l.b16 %v1177
    %v1805 = vunpack.c.h.b16 %v1177
    %v1806 = vunpack.c.l.b16 %v1178
    %v1807 = vunpack.c.h.b16 %v1178
    %v1808 = vunpack.c.l.b16 %v1179
    %v1809 = vunpack.c.h.b16 %v1179
    %v1810 = vunpack.c.l.b16 %v1180
    %v1811 = vunpack.c.l.b16 %v1181
    %v1812 = vunpack.c.h.b16 %v1181
    %v1813 = vunpack.c.l.b16 %v1182
    %v1814 = vunpack.c.h.b16 %v1182
    %v1815 = vunpack.c.l.b16 %v1183
    %v1816 = vunpack.c.h.b16 %v1183
    %v1817 = vunpack.c.l.b16 %v1184
    %v1818 = vunpack.c.l.b16 %v1185
    %v1819 = vunpack.c.h.b16 %v1185
    %v1820 = vunpack.c.l.b16 %v1186
    %v1821 = vunpack.c.h.b16 %v1186
    %v1822 = vunpack.c.l.b16 %v1187
    %v1823 = vunpack.c.h.b16 %v1187
    %v1824 = vunpack.c.l.b16 %v1188
    %v1825 = vunpack.c.l.b16 %v1189
    %v1826 = vunpack.c.h.b16 %v1189
    %v1827 = vunpack.c.l.b16 %v1190
    %v1828 = vunpack.c.h.b16 %v1190
    %v1829 = vunpack.c.l.b16 %v1191
    %v1830 = vunpack.c.h.b16 %v1191
    %v1831 = vunpack.c.l.b16 %v1192
    %v1832 = vunpack.c.l.b16 %v1193
    %v1833 = vunpack.c.h.b16 %v1193
    %v1834 = vunpack.c.l.b16 %v1194
    %v1835 = vunpack.c.h.b16 %v1194
    %v1836 = vunpack.c.l.b16 %v1195
    %v1837 = vunpack.c.h.b16 %v1195
    %v1838 = vunpack.c.l.b16 %v1196
    %v1839 = vunpack.c.l.b16 %v1197
    %v1840 = vunpack.c.h.b16 %v1197
    %v1841 = vunpack.c.l.b16 %v1198
    %v1842 = vunpack.c.h.b16 %v1198
    %v1843 = vunpack.c.l.b16 %v1199
    %v1844 = vunpack.c.h.b16 %v1199
    %v1845 = vunpack.c.l.b16 %v1200
    %v1846 = vunpack.c.l.b16 %v1201
    %v1847 = vunpack.c.h.b16 %v1201
    %v1848 = vunpack.c.l.b16 %v1202
    %v1849 = vunpack.c.h.b16 %v1202
    %v1850 = vunpack.c.l.b16 %v1203
    %v1851 = vunpack.c.h.b16 %v1203
    %v1852 = vunpack.c.l.b16 %v1204
    %v1853 = vunpack.c.l.b16 %v1205
    %v1854 = vunpack.c.h.b16 %v1205
    %v1855 = vunpack.c.l.b16 %v1206
    %v1856 = vunpack.c.h.b16 %v1206
    %v1857 = vunpack.c.l.b16 %v1207
    %v1858 = vunpack.c.h.b16 %v1207
    %v1859 = vunpack.c.l.b16 %v1208
    %v1860 = vunpack.c.l.b16 %v1209
    %v1861 = vunpack.c.h.b16 %v1209
    %v1862 = vunpack.c.l.b16 %v1210
    %v1863 = vunpack.c.h.b16 %v1210
    %v1864 = vunpack.c.l.b16 %v1211
    %v1865 = vunpack.c.h.b16 %v1211
    %v1866 = vunpack.c.l.b16 %v1212
    %v1867 = vunpack.c.l.b16 %v1213
    %v1868 = vunpack.c.h.b16 %v1213
    %v1869 = vunpack.c.l.b16 %v1214
    %v1870 = vunpack.c.h.b16 %v1214
    %v1871 = vunpack.c.l.b16 %v1215
    %v1872 = vunpack.c.h.b16 %v1215
    %v1873 = vunpack.c.l.b16 %v1216
    %v1874 = vunpack.c.l.b16 %v1217
    %v1875 = vunpack.c.h.b16 %v1217
    %v1876 = vunpack.c.l.b16 %v1218
    %v1877 = vunpack.c.h.b16 %v1218
    %v1878 = vunpack.c.l.b16 %v1219
    %v1879 = vunpack.c.h.b16 %v1219
    %v1880 = vunpack.c.l.b16 %v1220
    %v1881 = vunpack.c.l.b16 %v1221
    %v1882 = vunpack.c.h.b16 %v1221
    %v1883 = vunpack.c.l.b16 %v1222
    %v1884 = vunpack.c.h.b16 %v1222
    %v1885 = vunpack.c.l.b16 %v1223
    %v1886 = vunpack.c.h.b16 %v1223
    %v1887 = vunpack.c.l.b16 %v1224
    %v1888 = vunpack.c.l.b16 %v1225
    %v1889 = vunpack.c.h.b16 %v1225
    %v1890 = vunpack.c.l.b16 %v1226
    %v1891 = vunpack.c.h.b16 %v1226
    %v1892 = vunpack.c.l.b16 %v1227
    %v1893 = vunpack.c.h.b16 %v1227
    %v1894 = vunpack.c.l.b16 %v1228
    %v1895 = vunpack.c.l.b16 %v1229
    %v1896 = vunpack.c.h.b16 %v1229
    %v1897 = vunpack.c.l.b16 %v1230
    %v1898 = vunpack.c.h.b16 %v1230
    %v1899 = vunpack.c.l.b16 %v1231
    %v1900 = vunpack.c.h.b16 %v1231
    %v1901 = vunpack.c.l.b16 %v1232
    %v1902 = vunpack.c.l.b16 %v1233
    %v1903 = vunpack.c.h.b16 %v1233
    %v1904 = vunpack.c.l.b16 %v1234
    %v1905 = vunpack.c.h.b16 %v1234
    %v1906 = vunpack.c.l.b16 %v1235
    %v1907 = vunpack.c.h.b16 %v1235
    %v1908 = vunpack.c.l.b16 %v1236
    %v1909 = vunpack.c.l.b16 %v1237
    %v1910 = vunpack.c.h.b16 %v1237
    %v1911 = vunpack.c.l.b16 %v1238
    %v1912 = vunpack.c.h.b16 %v1238
    %v1913 = vunpack.c.l.b16 %v1239
    %v1914 = vunpack.c.h.b16 %v1239
    %v1915 = vunpack.c.l.b16 %v1240
    %v1916 = vunpack.c.l.b16 %v1241
    %v1917 = vunpack.c.h.b16 %v1241
    %v1918 = vunpack.c.l.b16 %v1242
    %v1919 = vunpack.c.h.b16 %v1242
    %v1920 = vunpack.c.l.b16 %v1243
    %v1921 = vunpack.c.h.b16 %v1243
    %v1922 = vunpack.c.l.b16 %v1244
    %v1923 = vunpack.c.l.b16 %v1245
    %v1924 = vunpack.c.h.b16 %v1245
    %v1925 = vunpack.c.l.b16 %v1246
    %v1926 = vunpack.c.h.b16 %v1246
    %v1927 = vunpack.c.l.b16 %v1247
    %v1928 = vunpack.c.h.b16 %v1247
    %v1929 = vunpack.c.l.b16 %v1248
    %v1930 = vunpack.c.l.b16 %v1249
    %v1931 = vunpack.c.h.b16 %v1249
    %v1932 = vunpack.c.l.b16 %v1250
    %v1933 = vunpack.c.h.b16 %v1250
    %v1934 = vunpack.c.l.b16 %v1251
    %v1935 = vunpack.c.h.b16 %v1251
    %v1936 = vunpack.c.l.b16 %v1252
    %v1937 = vunpack.c.l.b16 %v1253
    %v1938 = vunpack.c.h.b16 %v1253
    %v1939 = vunpack.c.l.b16 %v1254
    %v1940 = vunpack.c.h.b16 %v1254
    %v1941 = vunpack.c.l.b16 %v1255
    %v1942 = vunpack.c.h.b16 %v1255
    %v1943 = vunpack.c.l.b16 %v1256
    %v1944 = vunpack.c.l.b16 %v1257
    %v1945 = vunpack.c.h.b16 %v1257
    %v1946 = vunpack.c.l.b16 %v1258
    %v1947 = vunpack.c.h.b16 %v1258
    %v1948 = vunpack.c.l.b16 %v1259
    %v1949 = vunpack.c.h.b16 %v1259
    %v1950 = vunpack.c.l.b16 %v1260
    %v1951 = vunpack.c.l.b16 %v1261
    %v1952 = vunpack.c.h.b16 %v1261
    %v1953 = vunpack.c.l.b16 %v1262
    %v1954 = vunpack.c.h.b16 %v1262
    %v1955 = vunpack.c.l.b16 %v1263
    %v1956 = vunpack.c.h.b16 %v1263
    %v1957 = vunpack.c.l.b16 %v1264
    %v1958 = vunpack.c.l.b16 %v1265
    %v1959 = vunpack.c.h.b16 %v1265
    %v1960 = vunpack.c.l.b16 %v1266
    %v1961 = vunpack.c.h.b16 %v1266
    %v1962 = vunpack.c.l.b16 %v1267
    %v1963 = vunpack.c.h.b16 %v1267
    %v1964 = vunpack.c.l.b16 %v1268
    %v1965 = vunpack.c.l.b16 %v1269
    %v1966 = vunpack.c.h.b16 %v1269
    %v1967 = vunpack.c.l.b16 %v1270
    %v1968 = vunpack.c.h.b16 %v1270
    %v1969 = vunpack.c.l.b16 %v1271
    %v1970 = vunpack.c.h.b16 %v1271
    %v1971 = vunpack.c.l.b16 %v1272
    %v1972 = vunpack.c.l.b16 %v1273
    %v1973 = vunpack.c.h.b16 %v1273
    %v1974 = vunpack.c.l.b16 %v1274
    %v1975 = vunpack.c.h.b16 %v1274
    %v1976 = vunpack.c.l.b16 %v1275
    %v1977 = vunpack.c.h.b16 %v1275
    %v1978 = vunpack.c.l.b16 %v1276
    %v1979 = vunpack.c.l.b16 %v1277
    %v1980 = vunpack.c.h.b16 %v1277
    %v1981 = vunpack.c.l.b16 %v1278
    %v1982 = vunpack.c.h.b16 %v1278
    %v1983 = vunpack.c.l.b16 %v1279
    %v1984 = vunpack.c.h.b16 %v1279
    %v1985 = vunpack.c.l.b16 %v1280
    %v1986 = vunpack.c.l.b16 %v1281
    %v1987 = vunpack.c.h.b16 %v1281
    %v1988 = vunpack.c.l.b16 %v1282
    %v1989 = vunpack.c.h.b16 %v1282
    %v1990 = vunpack.c.l.b16 %v1283
    %v1991 = vunpack.c.h.b16 %v1283
    %v1992 = vunpack.c.l.b16 %v1284
    %v1993 = vunpack.c.l.b16 %v1285
    %v1994 = vunpack.c.h.b16 %v1285
    %v1995 = vunpack.c.l.b16 %v1286
    %v1996 = vunpack.c.h.b16 %v1286
    %v1997 = vunpack.c.l.b16 %v1287
    %v1998 = vunpack.c.h.b16 %v1287
    %v1999 = vunpack.c.l.b16 %v1288
    %v2000 = vunpack.c.l.b16 %v1289
    %v2001 = vunpack.c.h.b16 %v1289
    %v2002 = vunpack.c.l.b16 %v1290
    %v2003 = vunpack.c.h.b16 %v1290
    %v2004 = vunpack.c.l.b16 %v1291
    %v2005 = vunpack.c.h.b16 %v1291
    %v2006 = vunpack.c.l.b16 %v1292
    %v2007 = vunpack.c.l.b16 %v1293
    %v2008 = vunpack.c.h.b16 %v1293
    %v2009 = vunpack.c.l.b16 %v1294
    %v2010 = vunpack.c.h.b16 %v1294
    %v2011 = vunpack.c.l.b16 %v1295
    %v2012 = vunpack.c.h.b16 %v1295
    %v2013 = vunpack.c.l.b16 %v1296
    %v2014 = vunpack.c.l.b16 %v1297
    %v2015 = vunpack.c.h.b16 %v1297
    %v2016 = vunpack.c.l.b16 %v1298
    %v2017 = vunpack.c.h.b16 %v1298
    %v2018 = vunpack.c.l.b16 %v1299
    %v2019 = vunpack.c.h.b16 %v1299
    %v2020 = vunpack.c.l.b16 %v1300
    %v2021 = vpack.c.b16 %v1580, %v1573
    %v2022 = vpack.c.b16 %v1581, %v1574
    %v2023 = vpack.c.b16 %v1582, %v1575
    %v2024 = vpack.c.b16 %v1583, %v1576
    %v2025 = vpack.c.b16 %v1584, %v1577
    %v2026 = vpack.c.b16 %v1585, %v1578
    %v2027 = vpack.c.b16 %v1586, %v1579
    %v2028 = vpack.c.b16 %v1594, %v1587
    %v2029 = vpack.c.b16 %v1595, %v1588
    %v2030 = vpack.c.b16 %v1596, %v1589
    %v2031 = vpack.c.b16 %v1597, %v1590
    %v2032 = vpack.c.b16 %v1598, %v1591
    %v2033 = vpack.c.b16 %v1599, %v1592
    %v2034 = vpack.c.b16 %v1600, %v1593
    %v2035 = vpack.c.b16 %v1608, %v1601
    %v2036 = vpack.c.b16 %v1609, %v1602
    %v2037 = vpack.c.b16 %v1610, %v1603
    %v2038 = vpack.c.b16 %v1611, %v1604
    %v2039 = vpack.c.b16 %v1612, %v1605
    %v2040 = vpack.c.b16 %v1613, %v1606
    %v2041 = vpack.c.b16 %v1614, %v1607
    %v2042 = vpack.c.b16 %v1622, %v1615
    %v2043 = vpack.c.b16 %v1623, %v1616
    %v2044 = vpack.c.b16 %v1624, %v1617
    %v2045 = vpack.c.b16 %v1625, %v1618
    %v2046 = vpack.c.b16 %v1626, %v1619
    %v2047 = vpack.c.b16 %v1627, %v1620
    %v2048 = vpack.c.b16 %v1628, %v1621
    %v2049 = vpack.c.b16 %v1636, %v1629
    %v2050 = vpack.c.b16 %v1637, %v1630
    %v2051 = vpack.c.b16 %v1638, %v1631
    %v2052 = vpack.c.b16 %v1639, %v1632
    %v2053 = vpack.c.b16 %v1640, %v1633
    %v2054 = vpack.c.b16 %v1641, %v1634
    %v2055 = vpack.c.b16 %v1642, %v1635
    %v2056 = vpack.c.b16 %v1650, %v1643
    %v2057 = vpack.c.b16 %v1651, %v1644
    %v2058 = vpack.c.b16 %v1652, %v1645
    %v2059 = vpack.c.b16 %v1653, %v1646
    %v2060 = vpack.c.b16 %v1654, %v1647
    %v2061 = vpack.c.b16 %v1655, %v1648
    %v2062 = vpack.c.b16 %v1656, %v1649
    %v2063 = vpack.c.b16 %v1664, %v1657
    %v2064 = vpack.c.b16 %v1665, %v1658
    %v2065 = vpack.c.b16 %v1666, %v1659
    %v2066 = vpack.c.b16 %v1667, %v1660
    %v2067 = vpack.c.b16 %v1668, %v1661
    %v2068 = vpack.c.b16 %v1669, %v1662
    %v2069 = vpack.c.b16 %v1670, %v1663
    %v2070 = vpack.c.b16 %v1678, %v1671
    %v2071 = vpack.c.b16 %v1679, %v1672
    %v2072 = vpack.c.b16 %v1680, %v1673
    %v2073 = vpack.c.b16 %v1681, %v1674
    %v2074 = vpack.c.b16 %v1682, %v1675
    %v2075 = vpack.c.b16 %v1683, %v1676
    %v2076 = vpack.c.b16 %v1684, %v1677
    %v2077 = vpack.c.b16 %v1692, %v1685
    %v2078 = vpack.c.b16 %v1693, %v1686
    %v2079 = vpack.c.b16 %v1694, %v1687
    %v2080 = vpack.c.b16 %v1695, %v1688
    %v2081 = vpack.c.b16 %v1696, %v1689
    %v2082 = vpack.c.b16 %v1697, %v1690
    %v2083 = vpack.c.b16 %v1698, %v1691
    %v2084 = vpack.c.b16 %v1706, %v1699
    %v2085 = vpack.c.b16 %v1707, %v1700
    %v2086 = vpack.c.b16 %v1708, %v1701
    %v2087 = vpack.c.b16 %v1709, %v1702
    %v2088 = vpack.c.b16 %v1710, %v1703
    %v2089 = vpack.c.b16 %v1711, %v1704
    %v2090 = vpack.c.b16 %v1712, %v1705
    %v2091 = vpack.c.b16 %v1720, %v1713
    %v2092 = vpack.c.b16 %v1721, %v1714
    %v2093 = vpack.c.b16 %v1722, %v1715
    %v2094 = vpack.c.b16 %v1723, %v1716
    %v2095 = vpack.c.b16 %v1724, %v1717
    %v2096 = vpack.c.b16 %v1725, %v1718
    %v2097 = vpack.c.b16 %v1726, %v1719
    %v2098 = vpack.c.b16 %v1734, %v1727
    %v2099 = vpack.c.b16 %v1735, %v1728
    %v2100 = vpack.c.b16 %v1736, %v1729
    %v2101 = vpack.c.b16 %v1737, %v1730
    %v2102 = vpack.c.b16 %v1738, %v1731
    %v2103 = vpack.c.b16 %v1739, %v1732
    %v2104 = vpack.c.b16 %v1740, %v1733
    %v2105 = vpack.c.b16 %v1748, %v1741
    %v2106 = vpack.c.b16 %v1749, %v1742
    %v2107 = vpack.c.b16 %v1750, %v1743
    %v2108 = vpack.c.b16 %v1751, %v1744
    %v2109 = vpack.c.b16 %v1752, %v1745
    %v2110 = vpack.c.b16 %v1753, %v1746
    %v2111 = vpack.c.b16 %v1754, %v1747
    %v2112 = vpack.c.b16 %v1762, %v1755
    %v2113 = vpack.c.b16 %v1763, %v1756
    %v2114 = vpack.c.b16 %v1764, %v1757
    %v2115 = vpack.c.b16 %v1765, %v1758
    %v2116 = vpack.c.b16 %v1766, %v1759
    %v2117 = vpack.c.b16 %v1767, %v1760
    %v2118 = vpack.c.b16 %v1768, %v1761
    %v2119 = vpack.c.b16 %v1776, %v1769
    %v2120 = vpack.c.b16 %v1777, %v1770
    %v2121 = vpack.c.b16 %v1778, %v1771
    %v2122 = vpack.c.b16 %v1779, %v1772
    %v2123 = vpack.c.b16 %v1780, %v1773
    %v2124 = vpack.c.b16 %v1781, %v1774
    %v2125 = vpack.c.b16 %v1782, %v1775
    %v2126 = vpack.c.b16 %v1790, %v1783
    %v2127 = vpack.c.b16 %v1791, %v1784
    %v2128 = vpack.c.b16 %v1792, %v1785
    %v2129 = vpack.c.b16 %v1793, %v1786
    %v2130 = vpack.c.b16 %v1794, %v1787
    %v2131 = vpack.c.b16 %v1795, %v1788
    %v2132 = vpack.c.b16 %v1796, %v1789
    %v2133 = vpack.c.b16 %v1804, %v1797
    %v2134 = vpack.c.b16 %v1805, %v1798
    %v2135 = vpack.c.b16 %v1806, %v1799
    %v2136 = vpack.c.b16 %v1807, %v1800
    %v2137 = vpack.c.b16 %v1808, %v1801
    %v2138 = vpack.c.b16 %v1809, %v1802
    %v2139 = vpack.c.b16 %v1810, %v1803
    %v2140 = vpack.c.b16 %v1818, %v1811
    %v2141 = vpack.c.b16 %v1819, %v1812
    %v2142 = vpack.c.b16 %v1820, %v1813
    %v2143 = vpack.c.b16 %v1821, %v1814
    %v2144 = vpack.c.b16 %v1822, %v1815
    %v2145 = vpack.c.b16 %v1823, %v1816
    %v2146 = vpack.c.b16 %v1824, %v1817
    %v2147 = vpack.c.b16 %v1832, %v1825
    %v2148 = vpack.c.b16 %v1833, %v1826
    %v2149 = vpack.c.b16 %v1834, %v1827
    %v2150 = vpack.c.b16 %v1835, %v1828
    %v2151 = vpack.c.b16 %v1836, %v1829
    %v2152 = vpack.c.b16 %v1837, %v1830
    %v2153 = vpack.c.b16 %v1838, %v1831
    %v2154 = vpack.c.b16 %v1846, %v1839
    %v2155 = vpack.c.b16 %v1847, %v1840
    %v2156 = vpack.c.b16 %v1848, %v1841
    %v2157 = vpack.c.b16 %v1849, %v1842
    %v2158 = vpack.c.b16 %v1850, %v1843
    %v2159 = vpack.c.b16 %v1851, %v1844
    %v2160 = vpack.c.b16 %v1852, %v1845
    %v2161 = vpack.c.b16 %v1860, %v1853
    %v2162 = vpack.c.b16 %v1861, %v1854
    %v2163 = vpack.c.b16 %v1862, %v1855
    %v2164 = vpack.c.b16 %v1863, %v1856
    %v2165 = vpack.c.b16 %v1864, %v1857
    %v2166 = vpack.c.b16 %v1865, %v1858
    %v2167 = vpack.c.b16 %v1866, %v1859
    %v2168 = vpack.c.b16 %v1874, %v1867
    %v2169 = vpack.c.b16 %v1875, %v1868
    %v2170 = vpack.c.b16 %v1876, %v1869
    %v2171 = vpack.c.b16 %v1877, %v1870
    %v2172 = vpack.c.b16 %v1878, %v1871
    %v2173 = vpack.c.b16 %v1879, %v1872
    %v2174 = vpack.c.b16 %v1880, %v1873
    %v2175 = vpack.c.b16 %v1888, %v1881
    %v2176 = vpack.c.b16 %v1889, %v1882
    %v2177 = vpack.c.b16 %v1890, %v1883
    %v2178 = vpack.c.b16 %v1891, %v1884
    %v2179 = vpack.c.b16 %v1892, %v1885
    %v2180 = vpack.c.b16 %v1893, %v1886
    %v2181 = vpack.c.b16 %v1894, %v1887
    %v2182 = vpack.c.b16 %v1902, %v1895
    %v2183 = vpack.c.b16 %v1903, %v1896
    %v2184 = vpack.c.b16 %v1904, %v1897
    %v2185 = vpack.c.b16 %v1905, %v1898
    %v2186 = vpack.c.b16 %v1906, %v1899
    %v2187 = vpack.c.b16 %v1907, %v1900
    %v2188 = vpack.c.b16 %v1908, %v1901
    %v2189 = vpack.c.b16 %v1916, %v1909
    %v2190 = vpack.c.b16 %v1917, %v1910
    %v2191 = vpack.c.b16 %v1918, %v1911
    %v2192 = vpack.c.b16 %v1919, %v1912
    %v2193 = vpack.c.b16 %v1920, %v1913
    %v2194 = vpack.c.b16 %v1921, %v1914
    %v2195 = vpack.c.b16 %v1922, %v1915
    %v2196 = vpack.c.b16 %v1930, %v1923
    %v2197 = vpack.c.b16 %v1931, %v1924
    %v2198 = vpack.c.b16 %v1932, %v1925
    %v2199 = vpack.c.b16 %v1933, %v1926
    %v2200 = vpack.c.b16 %v1934, %v1927
    %v2201 = vpack.c.b16 %v1935, %v1928
    %v2202 = vpack.c.b16 %v1936, %v1929
    %v2203 = vpack.c.b16 %v1944, %v1937
    %v2204 = vpack.c.b16 %v1945, %v1938
    %v2205 = vpack.c.b16 %v1946, %v1939
    %v2206 = vpack.c.b16 %v1947, %v1940
    %v2207 = vpack.c.b16 %v1948, %v1941
    %v2208 = vpack.c.b16 %v1949, %v1942
    %v2209 = vpack.c.b16 %v1950, %v1943
    %v2210 = vpack.c.b16 %v1958, %v1951
    %v2211 = vpack.c.b16 %v1959, %v1952
    %v2212 = vpack.c.b16 %v1960, %v1953
    %v2213 = vpack.c.b16 %v1961, %v1954
    %v2214 = vpack.c.b16 %v1962, %v1955
    %v2215 = vpack.c.b16 %v1963, %v1956
    %v2216 = vpack.c.b16 %v1964, %v1957
    %v2217 = vpack.c.b16 %v1972, %v1965
    %v2218 = vpack.c.b16 %v1973, %v1966
    %v2219 = vpack.c.b16 %v1974, %v1967
    %v2220 = vpack.c.b16 %v1975, %v1968
    %v2221 = vpack.c.b16 %v1976, %v1969
    %v2222 = vpack.c.b16 %v1977, %v1970
    %v2223 = vpack.c.b16 %v1978, %v1971
    %v2224 = vpack.c.b16 %v1986, %v1979
    %v2225 = vpack.c.b16 %v1987, %v1980
    %v2226 = vpack.c.b16 %v1988, %v1981
    %v2227 = vpack.c.b16 %v1989, %v1982
    %v2228 = vpack.c.b16 %v1990, %v1983
    %v2229 = vpack.c.b16 %v1991, %v1984
    %v2230 = vpack.c.b16 %v1992, %v1985
    %v2231 = vpack.c.b16 %v2000, %v1993
    %v2232 = vpack.c.b16 %v2001, %v1994
    %v2233 = vpack.c.b16 %v2002, %v1995
    %v2234 = vpack.c.b16 %v2003, %v1996
    %v2235 = vpack.c.b16 %v2004, %v1997
    %v2236 = vpack.c.b16 %v2005, %v1998
    %v2237 = vpack.c.b16 %v2006, %v1999
    %v2238 = vpack.c.b16 %v2014, %v2007
    %v2239 = vpack.c.b16 %v2015, %v2008
    %v2240 = vpack.c.b16 %v2016, %v2009
    %v2241 = vpack.c.b16 %v2017, %v2010
    %v2242 = vpack.c.b16 %v2018, %v2011
    %v2243 = vpack.c.b16 %v2019, %v2012
    %v2244 = vpack.c.b16 %v2020, %v2013
    %2469 = vmatpush.bf16.msra.mxu0 %v2070
    %2470 = vmatpush.bf16.msra.mxu0 %v2063
    %2471 = vmatpush.bf16.msra.mxu0 %v2056
    %2472 = vmatpush.bf16.msra.mxu0 %v2049
    %2473 = vmatpush.bf16.msra.mxu0 %v2042
    %2474 = vmatpush.bf16.msra.mxu0 %v2035
    %2475 = vmatpush.bf16.msra.mxu0 %v2028
    %2476 = vmatpush.bf16.msra.mxu0 %v2021
    %2477 = vmatmul.bf16.gmra.mxu0 %v1041
    %v2478 = vpop.f32.mrf.mxu0
    %v2479 = vadd.f32 %v1303, %v2478
    %v2480 = vpop.f32.mrf.mxu0
    %2481 = vdwg.mxu0
    %2482 = vmatpush.bf16.msra.mxu0 %v2126
    %2483 = vmatpush.bf16.msra.mxu0 %v2119
    %2484 = vmatpush.bf16.msra.mxu0 %v2112
    %2485 = vmatpush.bf16.msra.mxu0 %v2105
    %2486 = vmatpush.bf16.msra.mxu0 %v2098
    %2487 = vmatpush.bf16.msra.mxu0 %v2091
    %2488 = vmatpush.bf16.msra.mxu0 %v2084
    %2489 = vmatpush.bf16.msra.mxu0 %v2077
    %2490 = vmatmul.bf16.gmra.mxu0 %v1042
    %v2491 = vpop.f32.mrf.mxu0
    %v2492 = vadd.f32 %v2479, %v2491
    %v2493 = vpop.f32.mrf.mxu0
    %2494 = vdwg.mxu0
    %2495 = vmatpush.bf16.msra.mxu0 %v2182
    %2496 = vmatpush.bf16.msra.mxu0 %v2175
    %2497 = vmatpush.bf16.msra.mxu0 %v2168
    %2498 = vmatpush.bf16.msra.mxu0 %v2161
    %2499 = vmatpush.bf16.msra.mxu0 %v2154
    %2500 = vmatpush.bf16.msra.mxu0 %v2147
    %2501 = vmatpush.bf16.msra.mxu0 %v2140
    %2502 = vmatpush.bf16.msra.mxu0 %v2133
    %2503 = vmatmul.bf16.gmra.mxu0 %v1043
    %v2504 = vpop.f32.mrf.mxu0
    %v2505 = vadd.f32 %v2492, %v2504
    %v2506 = vpop.f32.mrf.mxu0
    %2507 = vdwg.mxu0
    %2508 = vmatpush.bf16.msra.mxu0 %v2238
    %2509 = vmatpush.bf16.msra.mxu0 %v2231
    %2510 = vmatpush.bf16.msra.mxu0 %v2224
    %2511 = vmatpush.bf16.msra.mxu0 %v2217
    %2512 = vmatpush.bf16.msra.mxu0 %v2210
    %2513 = vmatpush.bf16.msra.mxu0 %v2203
    %2514 = vmatpush.bf16.msra.mxu0 %v2196
    %2515 = vmatpush.bf16.msra.mxu0 %v2189
    %2516 = vmatmul.bf16.gmra.mxu0 %v1044
    %v2517 = vpop.f32.mrf.mxu0
    %v2518 = vadd.f32 %v2505, %v2517
    %v2519 = vpop.f32.mrf.mxu0
    %2520 = vdwg.mxu0
    %2521 = vmatpush.bf16.msra.mxu0 %v2071
    %2522 = vmatpush.bf16.msra.mxu0 %v2064
    %2523 = vmatpush.bf16.msra.mxu0 %v2057
    %2524 = vmatpush.bf16.msra.mxu0 %v2050
    %2525 = vmatpush.bf16.msra.mxu0 %v2043
    %2526 = vmatpush.bf16.msra.mxu0 %v2036
    %2527 = vmatpush.bf16.msra.mxu0 %v2029
    %2528 = vmatpush.bf16.msra.mxu0 %v2022
    %2529 = vmatmul.bf16.gmra.mxu0 %v1041
    %v2530 = vpop.f32.mrf.mxu0
    %v2531 = vadd.f32 %v1304, %v2530
    %v2532 = vpop.f32.mrf.mxu0
    %2533 = vdwg.mxu0
    %2534 = vmatpush.bf16.msra.mxu0 %v2127
    %2535 = vmatpush.bf16.msra.mxu0 %v2120
    %2536 = vmatpush.bf16.msra.mxu0 %v2113
    %2537 = vmatpush.bf16.msra.mxu0 %v2106
    %2538 = vmatpush.bf16.msra.mxu0 %v2099
    %2539 = vmatpush.bf16.msra.mxu0 %v2092
    %2540 = vmatpush.bf16.msra.mxu0 %v2085
    %2541 = vmatpush.bf16.msra.mxu0 %v2078
    %2542 = vmatmul.bf16.gmra.mxu0 %v1042
    %v2543 = vpop.f32.mrf.mxu0
    %v2544 = vadd.f32 %v2531, %v2543
    %v2545 = vpop.f32.mrf.mxu0
    %2546 = vdwg.mxu0
    %2547 = vmatpush.bf16.msra.mxu0 %v2183
    %2548 = vmatpush.bf16.msra.mxu0 %v2176
    %2549 = vmatpush.bf16.msra.mxu0 %v2169
    %2550 = vmatpush.bf16.msra.mxu0 %v2162
    %2551 = vmatpush.bf16.msra.mxu0 %v2155
    %2552 = vmatpush.bf16.msra.mxu0 %v2148
    %2553 = vmatpush.bf16.msra.mxu0 %v2141
    %2554 = vmatpush.bf16.msra.mxu0 %v2134
    %2555 = vmatmul.bf16.gmra.mxu0 %v1043
    %v2556 = vpop.f32.mrf.mxu0
    %v2557 = vadd.f32 %v2544, %v2556
    %v2558 = vpop.f32.mrf.mxu0
    %2559 = vdwg.mxu0
    %2560 = vmatpush.bf16.msra.mxu0 %v2239
    %2561 = vmatpush.bf16.msra.mxu0 %v2232
    %2562 = vmatpush.bf16.msra.mxu0 %v2225
    %2563 = vmatpush.bf16.msra.mxu0 %v2218
    %2564 = vmatpush.bf16.msra.mxu0 %v2211
    %2565 = vmatpush.bf16.msra.mxu0 %v2204
    %2566 = vmatpush.bf16.msra.mxu0 %v2197
    %2567 = vmatpush.bf16.msra.mxu0 %v2190
    %2568 = vmatmul.bf16.gmra.mxu0 %v1044
    %v2569 = vpop.f32.mrf.mxu0
    %v2570 = vadd.f32 %v2557, %v2569
    %v2571 = vpop.f32.mrf.mxu0
    %2572 = vdwg.mxu0
    %2573 = vmatpush.bf16.msra.mxu0 %v2072
    %2574 = vmatpush.bf16.msra.mxu0 %v2065
    %2575 = vmatpush.bf16.msra.mxu0 %v2058
    %2576 = vmatpush.bf16.msra.mxu0 %v2051
    %2577 = vmatpush.bf16.msra.mxu0 %v2044
    %2578 = vmatpush.bf16.msra.mxu0 %v2037
    %2579 = vmatpush.bf16.msra.mxu0 %v2030
    %2580 = vmatpush.bf16.msra.mxu0 %v2023
    %2581 = vmatmul.bf16.gmra.mxu0 %v1041
    %v2582 = vpop.f32.mrf.mxu0
    %v2583 = vadd.f32 %v1305, %v2582
    %v2584 = vpop.f32.mrf.mxu0
    %2585 = vdwg.mxu0
    %2586 = vmatpush.bf16.msra.mxu0 %v2128
    %2587 = vmatpush.bf16.msra.mxu0 %v2121
    %2588 = vmatpush.bf16.msra.mxu0 %v2114
    %2589 = vmatpush.bf16.msra.mxu0 %v2107
    %2590 = vmatpush.bf16.msra.mxu0 %v2100
    %2591 = vmatpush.bf16.msra.mxu0 %v2093
    %2592 = vmatpush.bf16.msra.mxu0 %v2086
    %2593 = vmatpush.bf16.msra.mxu0 %v2079
    %2594 = vmatmul.bf16.gmra.mxu0 %v1042
    %v2595 = vpop.f32.mrf.mxu0
    %v2596 = vadd.f32 %v2583, %v2595
    %v2597 = vpop.f32.mrf.mxu0
    %2598 = vdwg.mxu0
    %2599 = vmatpush.bf16.msra.mxu0 %v2184
    %2600 = vmatpush.bf16.msra.mxu0 %v2177
    %2601 = vmatpush.bf16.msra.mxu0 %v2170
    %2602 = vmatpush.bf16.msra.mxu0 %v2163
    %2603 = vmatpush.bf16.msra.mxu0 %v2156
    %2604 = vmatpush.bf16.msra.mxu0 %v2149
    %2605 = vmatpush.bf16.msra.mxu0 %v2142
    %2606 = vmatpush.bf16.msra.mxu0 %v2135
    %2607 = vmatmul.bf16.gmra.mxu0 %v1043
    %v2608 = vpop.f32.mrf.mxu0
    %v2609 = vadd.f32 %v2596, %v2608
    %v2610 = vpop.f32.mrf.mxu0
    %2611 = vdwg.mxu0
    %2612 = vmatpush.bf16.msra.mxu0 %v2240
    %2613 = vmatpush.bf16.msra.mxu0 %v2233
    %2614 = vmatpush.bf16.msra.mxu0 %v2226
    %2615 = vmatpush.bf16.msra.mxu0 %v2219
    %2616 = vmatpush.bf16.msra.mxu0 %v2212
    %2617 = vmatpush.bf16.msra.mxu0 %v2205
    %2618 = vmatpush.bf16.msra.mxu0 %v2198
    %2619 = vmatpush.bf16.msra.mxu0 %v2191
    %2620 = vmatmul.bf16.gmra.mxu0 %v1044
    %v2621 = vpop.f32.mrf.mxu0
    %v2622 = vadd.f32 %v2609, %v2621
    %v2623 = vpop.f32.mrf.mxu0
    %2624 = vdwg.mxu0
    %2625 = vmatpush.bf16.msra.mxu0 %v2073
    %2626 = vmatpush.bf16.msra.mxu0 %v2066
    %2627 = vmatpush.bf16.msra.mxu0 %v2059
    %2628 = vmatpush.bf16.msra.mxu0 %v2052
    %2629 = vmatpush.bf16.msra.mxu0 %v2045
    %2630 = vmatpush.bf16.msra.mxu0 %v2038
    %2631 = vmatpush.bf16.msra.mxu0 %v2031
    %2632 = vmatpush.bf16.msra.mxu0 %v2024
    %2633 = vmatmul.bf16.gmra.mxu0 %v1041
    %v2634 = vpop.f32.mrf.mxu0
    %v2635 = vadd.f32 %v1306, %v2634
    %v2636 = vpop.f32.mrf.mxu0
    %2637 = vdwg.mxu0
    %2638 = vmatpush.bf16.msra.mxu0 %v2129
    %2639 = vmatpush.bf16.msra.mxu0 %v2122
    %2640 = vmatpush.bf16.msra.mxu0 %v2115
    %2641 = vmatpush.bf16.msra.mxu0 %v2108
    %2642 = vmatpush.bf16.msra.mxu0 %v2101
    %2643 = vmatpush.bf16.msra.mxu0 %v2094
    %2644 = vmatpush.bf16.msra.mxu0 %v2087
    %2645 = vmatpush.bf16.msra.mxu0 %v2080
    %2646 = vmatmul.bf16.gmra.mxu0 %v1042
    %v2647 = vpop.f32.mrf.mxu0
    %v2648 = vadd.f32 %v2635, %v2647
    %v2649 = vpop.f32.mrf.mxu0
    %2650 = vdwg.mxu0
    %2651 = vmatpush.bf16.msra.mxu0 %v2185
    %2652 = vmatpush.bf16.msra.mxu0 %v2178
    %2653 = vmatpush.bf16.msra.mxu0 %v2171
    %2654 = vmatpush.bf16.msra.mxu0 %v2164
    %2655 = vmatpush.bf16.msra.mxu0 %v2157
    %2656 = vmatpush.bf16.msra.mxu0 %v2150
    %2657 = vmatpush.bf16.msra.mxu0 %v2143
    %2658 = vmatpush.bf16.msra.mxu0 %v2136
    %2659 = vmatmul.bf16.gmra.mxu0 %v1043
    %v2660 = vpop.f32.mrf.mxu0
    %v2661 = vadd.f32 %v2648, %v2660
    %v2662 = vpop.f32.mrf.mxu0
    %2663 = vdwg.mxu0
    %2664 = vmatpush.bf16.msra.mxu0 %v2241
    %2665 = vmatpush.bf16.msra.mxu0 %v2234
    %2666 = vmatpush.bf16.msra.mxu0 %v2227
    %2667 = vmatpush.bf16.msra.mxu0 %v2220
    %2668 = vmatpush.bf16.msra.mxu0 %v2213
    %2669 = vmatpush.bf16.msra.mxu0 %v2206
    %2670 = vmatpush.bf16.msra.mxu0 %v2199
    %2671 = vmatpush.bf16.msra.mxu0 %v2192
    %2672 = vmatmul.bf16.gmra.mxu0 %v1044
    %v2673 = vpop.f32.mrf.mxu0
    %v2674 = vadd.f32 %v2661, %v2673
    %v2675 = vpop.f32.mrf.mxu0
    %2676 = vdwg.mxu0
    %2677 = vmatpush.bf16.msra.mxu0 %v2074
    %2678 = vmatpush.bf16.msra.mxu0 %v2067
    %2679 = vmatpush.bf16.msra.mxu0 %v2060
    %2680 = vmatpush.bf16.msra.mxu0 %v2053
    %2681 = vmatpush.bf16.msra.mxu0 %v2046
    %2682 = vmatpush.bf16.msra.mxu0 %v2039
    %2683 = vmatpush.bf16.msra.mxu0 %v2032
    %2684 = vmatpush.bf16.msra.mxu0 %v2025
    %2685 = vmatmul.bf16.gmra.mxu0 %v1041
    %v2686 = vpop.f32.mrf.mxu0
    %v2687 = vadd.f32 %v1307, %v2686
    %v2688 = vpop.f32.mrf.mxu0
    %2689 = vdwg.mxu0
    %2690 = vmatpush.bf16.msra.mxu0 %v2130
    %2691 = vmatpush.bf16.msra.mxu0 %v2123
    %2692 = vmatpush.bf16.msra.mxu0 %v2116
    %2693 = vmatpush.bf16.msra.mxu0 %v2109
    %2694 = vmatpush.bf16.msra.mxu0 %v2102
    %2695 = vmatpush.bf16.msra.mxu0 %v2095
    %2696 = vmatpush.bf16.msra.mxu0 %v2088
    %2697 = vmatpush.bf16.msra.mxu0 %v2081
    %2698 = vmatmul.bf16.gmra.mxu0 %v1042
    %v2699 = vpop.f32.mrf.mxu0
    %v2700 = vadd.f32 %v2687, %v2699
    %v2701 = vpop.f32.mrf.mxu0
    %2702 = vdwg.mxu0
    %2703 = vmatpush.bf16.msra.mxu0 %v2186
    %2704 = vmatpush.bf16.msra.mxu0 %v2179
    %2705 = vmatpush.bf16.msra.mxu0 %v2172
    %2706 = vmatpush.bf16.msra.mxu0 %v2165
    %2707 = vmatpush.bf16.msra.mxu0 %v2158
    %2708 = vmatpush.bf16.msra.mxu0 %v2151
    %2709 = vmatpush.bf16.msra.mxu0 %v2144
    %2710 = vmatpush.bf16.msra.mxu0 %v2137
    %2711 = vmatmul.bf16.gmra.mxu0 %v1043
    %v2712 = vpop.f32.mrf.mxu0
    %v2713 = vadd.f32 %v2700, %v2712
    %v2714 = vpop.f32.mrf.mxu0
    %2715 = vdwg.mxu0
    %2716 = vmatpush.bf16.msra.mxu0 %v2242
    %2717 = vmatpush.bf16.msra.mxu0 %v2235
    %2718 = vmatpush.bf16.msra.mxu0 %v2228
    %2719 = vmatpush.bf16.msra.mxu0 %v2221
    %2720 = vmatpush.bf16.msra.mxu0 %v2214
    %2721 = vmatpush.bf16.msra.mxu0 %v2207
    %2722 = vmatpush.bf16.msra.mxu0 %v2200
    %2723 = vmatpush.bf16.msra.mxu0 %v2193
    %2724 = vmatmul.bf16.gmra.mxu0 %v1044
    %v2725 = vpop.f32.mrf.mxu0
    %v2726 = vadd.f32 %v2713, %v2725
    %v2727 = vpop.f32.mrf.mxu0
    %2728 = vdwg.mxu0
    %2729 = vmatpush.bf16.msra.mxu0 %v2075
    %2730 = vmatpush.bf16.msra.mxu0 %v2068
    %2731 = vmatpush.bf16.msra.mxu0 %v2061
    %2732 = vmatpush.bf16.msra.mxu0 %v2054
    %2733 = vmatpush.bf16.msra.mxu0 %v2047
    %2734 = vmatpush.bf16.msra.mxu0 %v2040
    %2735 = vmatpush.bf16.msra.mxu0 %v2033
    %2736 = vmatpush.bf16.msra.mxu0 %v2026
    %2737 = vmatmul.bf16.gmra.mxu0 %v1041
    %v2738 = vpop.f32.mrf.mxu0
    %v2739 = vadd.f32 %v1308, %v2738
    %v2740 = vpop.f32.mrf.mxu0
    %2741 = vdwg.mxu0
    %2742 = vmatpush.bf16.msra.mxu0 %v2131
    %2743 = vmatpush.bf16.msra.mxu0 %v2124
    %2744 = vmatpush.bf16.msra.mxu0 %v2117
    %2745 = vmatpush.bf16.msra.mxu0 %v2110
    %2746 = vmatpush.bf16.msra.mxu0 %v2103
    %2747 = vmatpush.bf16.msra.mxu0 %v2096
    %2748 = vmatpush.bf16.msra.mxu0 %v2089
    %2749 = vmatpush.bf16.msra.mxu0 %v2082
    %2750 = vmatmul.bf16.gmra.mxu0 %v1042
    %v2751 = vpop.f32.mrf.mxu0
    %v2752 = vadd.f32 %v2739, %v2751
    %v2753 = vpop.f32.mrf.mxu0
    %2754 = vdwg.mxu0
    %2755 = vmatpush.bf16.msra.mxu0 %v2187
    %2756 = vmatpush.bf16.msra.mxu0 %v2180
    %2757 = vmatpush.bf16.msra.mxu0 %v2173
    %2758 = vmatpush.bf16.msra.mxu0 %v2166
    %2759 = vmatpush.bf16.msra.mxu0 %v2159
    %2760 = vmatpush.bf16.msra.mxu0 %v2152
    %2761 = vmatpush.bf16.msra.mxu0 %v2145
    %2762 = vmatpush.bf16.msra.mxu0 %v2138
    %2763 = vmatmul.bf16.gmra.mxu0 %v1043
    %v2764 = vpop.f32.mrf.mxu0
    %v2765 = vadd.f32 %v2752, %v2764
    %v2766 = vpop.f32.mrf.mxu0
    %2767 = vdwg.mxu0
    %2768 = vmatpush.bf16.msra.mxu0 %v2243
    %2769 = vmatpush.bf16.msra.mxu0 %v2236
    %2770 = vmatpush.bf16.msra.mxu0 %v2229
    %2771 = vmatpush.bf16.msra.mxu0 %v2222
    %2772 = vmatpush.bf16.msra.mxu0 %v2215
    %2773 = vmatpush.bf16.msra.mxu0 %v2208
    %2774 = vmatpush.bf16.msra.mxu0 %v2201
    %2775 = vmatpush.bf16.msra.mxu0 %v2194
    %2776 = vmatmul.bf16.gmra.mxu0 %v1044
    %v2777 = vpop.f32.mrf.mxu0
    %v2778 = vadd.f32 %v2765, %v2777
    %v2779 = vpop.f32.mrf.mxu0
    %2780 = vdwg.mxu0
    %2781 = vmatpush.bf16.msra.mxu0 %v2076
    %2782 = vmatpush.bf16.msra.mxu0 %v2069
    %2783 = vmatpush.bf16.msra.mxu0 %v2062
    %2784 = vmatpush.bf16.msra.mxu0 %v2055
    %2785 = vmatpush.bf16.msra.mxu0 %v2048
    %2786 = vmatpush.bf16.msra.mxu0 %v2041
    %2787 = vmatpush.bf16.msra.mxu0 %v2034
    %2788 = vmatpush.bf16.msra.mxu0 %v2027
    %2789 = vmatmul.bf16.gmra.mxu0 %v1041
    %v2790 = vpop.f32.mrf.mxu0
    %v2791 = vadd.f32 %v1309, %v2790
    %v2792 = vpop.f32.mrf.mxu0
    %2793 = vdwg.mxu0
    %2794 = vmatpush.bf16.msra.mxu0 %v2132
    %2795 = vmatpush.bf16.msra.mxu0 %v2125
    %2796 = vmatpush.bf16.msra.mxu0 %v2118
    %2797 = vmatpush.bf16.msra.mxu0 %v2111
    %2798 = vmatpush.bf16.msra.mxu0 %v2104
    %2799 = vmatpush.bf16.msra.mxu0 %v2097
    %2800 = vmatpush.bf16.msra.mxu0 %v2090
    %2801 = vmatpush.bf16.msra.mxu0 %v2083
    %2802 = vmatmul.bf16.gmra.mxu0 %v1042
    %v2803 = vpop.f32.mrf.mxu0
    %v2804 = vadd.f32 %v2791, %v2803
    %v2805 = vpop.f32.mrf.mxu0
    %2806 = vdwg.mxu0
    %2807 = vmatpush.bf16.msra.mxu0 %v2188
    %2808 = vmatpush.bf16.msra.mxu0 %v2181
    %2809 = vmatpush.bf16.msra.mxu0 %v2174
    %2810 = vmatpush.bf16.msra.mxu0 %v2167
    %2811 = vmatpush.bf16.msra.mxu0 %v2160
    %2812 = vmatpush.bf16.msra.mxu0 %v2153
    %2813 = vmatpush.bf16.msra.mxu0 %v2146
    %2814 = vmatpush.bf16.msra.mxu0 %v2139
    %2815 = vmatmul.bf16.gmra.mxu0 %v1043
    %v2816 = vpop.f32.mrf.mxu0
    %v2817 = vadd.f32 %v2804, %v2816
    %v2818 = vpop.f32.mrf.mxu0
    %2819 = vdwg.mxu0
    %2820 = vmatpush.bf16.msra.mxu0 %v2244
    %2821 = vmatpush.bf16.msra.mxu0 %v2237
    %2822 = vmatpush.bf16.msra.mxu0 %v2230
    %2823 = vmatpush.bf16.msra.mxu0 %v2223
    %2824 = vmatpush.bf16.msra.mxu0 %v2216
    %2825 = vmatpush.bf16.msra.mxu0 %v2209
    %2826 = vmatpush.bf16.msra.mxu0 %v2202
    %2827 = vmatpush.bf16.msra.mxu0 %v2195
    %2828 = vmatmul.bf16.gmra.mxu0 %v1044
    %v2829 = vpop.f32.mrf.mxu0
    %v2830 = vadd.f32 %v2817, %v2829
    %v2831 = vpop.f32.mrf.mxu0
    %2832 = vdwg.mxu0
    %v2833 = vtanh.pop %v2518
    %v2834 = vtanh.pop %v2570
    %v2835 = vtanh.pop %v2622
    %v2836 = vtanh.pop %v2674
    %v2837 = vtanh.pop %v2726
    %v2838 = vtanh.pop %v2778
    %v2839 = vtanh.pop %v2830
    %2840 = vst [vmem:[#allocation14] sm:$0xff] %v2833
    %2841 = vst [vmem:[#allocation14 + $0x8] sm:$0xff] %v2834
    %2842 = vst [vmem:[#allocation14 + $0x10] sm:$0xff] %v2835
    %2843 = vst [vmem:[#allocation14 + $0x18] sm:$0xff] %v2836
    %2844 = vst [vmem:[#allocation14 + $0x20] sm:$0xff] %v2837
    %2845 = vst [vmem:[#allocation14 + $0x28] sm:$0xff] %v2838
    %2846 = vst [vmem:[#allocation14 + $0x30] sm:$0xff] %v2839
    // Predicated region
    $region90: #{generator_forward.1} parent=1 // pred_check
      _
    $region91: #{generator_forward.1} parent=1 // pred_check_branch
      %2848 = sbr.rel (0) target = $region93
    $region92: #{generator_forward.1} parent=1 // pred_region
      %2850 = vsyncadd [#allocation4], 0
      %s2852 = sshll.u32 [#allocation14], 4
      %s2853 = int_to_ptr.vmem [resolvable:$true] %s2852
      %s2854 = sshll.u32 %s15, 4
      %s2855 = int_to_ptr.hbm [resolvable:$true] %s2854
      %2857 = dma.vmem_to_hbm [thread:$0]  %s2853, 896, %s2855, [#allocation4]
    $region93: #{generator_forward.1} parent=1 // pred_fallthru
      _
    // Predicated region
    $region94: #{generator_forward.1} parent=1 // pred_check
      _
    $region95: #{generator_forward.1} parent=1 // pred_check_branch
      %2859 = sbr.rel (0) target = $region97
    $region96: #{generator_forward.1} parent=1 // pred_region
      %2861 = dma.done [#allocation4], 896
    $region97: #{generator_forward.1} parent=1 // pred_fallthru
      _
    %2862 = vsyncpa [#allocation3], 1
    %2863 = vsyncpa [#allocation6], 1
    %2864 = vsyncpa [#allocation9], 1
    %2865 = vsyncpa [#allocation12], 1
    %2866 = vsyncpa [#allocation4], 1

</llo_original>
